<compile_context>
chip_gen: v6e
topology: v6e:2x2x1
jax: 0.10.0
libtpu: 0.0.40
codegen_flags: <defaults>
</compile_context>

<pallas_src>
import jax
import jax.numpy as jnp
from jax.experimental import pallas as pl
from jax.experimental.pallas import tpu as pltpu

NEG_SLOPE = 0.01  # nn.LeakyReLU default negative_slope


def _round_up(n, m):
    return -(-n // m) * m


def make_mlp_kernel(num_hidden, two_class):
    """Kernel factory: `num_hidden` x [Linear -> LeakyReLU] then a folded head
    (softmax over 2 classes == sigmoid(l1 - l0); output_size==1 is a plain sigmoid)."""

    def kernel(*refs):
        x_ref = refs[0]
        o_ref = refs[-1]
        p_refs = refs[1:-1]

        # f32 -> bf16 cast inside the kernel (hides under the MXU).
        h = x_ref[...].astype(jnp.bfloat16)
        a = None
        # Trace-time unrolled so the scheduler can interleave each MXU push with the
        # previous layer's VPU epilogue.
        for l in range(num_hidden):
            w_ref = p_refs[2 * l]
            b_ref = p_refs[2 * l + 1]
            y = jnp.dot(h, w_ref[...], preferred_element_type=jnp.float32) + b_ref[...]
            a = jnp.maximum(y, NEG_SLOPE * y)          # LeakyReLU: 2 VALU ops/elem
            if l + 1 < num_hidden:
                h = a.astype(jnp.bfloat16)             # bf16 back to the MXU
            # last layer: keep `a` in f32 for the head (no bf16 round-trip)

        wd_ref = p_refs[-2]                            # (1, L) f32 folded head weights
        bd_ref = p_refs[-1]                            # (1, 1) f32 folded head bias
        # (1, L) x (TB, L) -> (1, TB): lane-dense logit row straight off the MXU.
        d = jnp.einsum("ol,bl->ob", wd_ref[...], a,
                       preferred_element_type=jnp.float32) + bd_ref[...]
        p1 = 1.0 / (1.0 + jnp.exp(-d))                 # EUP exp; (1, TB)
        if two_class:
            row = jax.lax.broadcasted_iota(jnp.int32, o_ref.shape, 0)   # (2, TB)
            o_ref[...] = jnp.where(row == 1, p1, 1.0 - p1).astype(o_ref.dtype)
        else:
            o_ref[...] = p1.astype(o_ref.dtype)

    return kernel


def prepare_params(params):
    """One-time parameter conversion (do NOT redo this per forward call):
    bf16 hidden weights, f32 biases, and a folded head row.
    params: list of (W, b) with W (in_features, out_features), b (1, out_features)."""
    *hidden, last = params
    w_last, b_last = last
    out_features = w_last.shape[1]
    assert out_features in (1, 2), "module defines only the Softmax(2)/Sigmoid(1) heads"

    flat = []
    for (w, b) in hidden:
        flat.append(jnp.asarray(w, jnp.bfloat16))
        flat.append(jnp.asarray(b, jnp.float32).reshape(1, -1))

    w_last = jnp.asarray(w_last, jnp.float32)
    b_last = jnp.asarray(b_last, jnp.float32).reshape(-1)
    if out_features == 2:
        # softmax over 2 classes == [1 - sigmoid(l1-l0), sigmoid(l1-l0)]
        wd = (w_last[:, 1] - w_last[:, 0]).reshape(1, -1)
        bd = (b_last[1] - b_last[0]).reshape(1, 1)
    else:
        wd = w_last[:, 0].reshape(1, -1)
        bd = b_last[0].reshape(1, 1)
    flat += [wd, bd]
    return tuple(flat), out_features


def mlp_forward(x, flat, out_features, *, block_rows=512):
    """x: (batch, input_size) f32.  flat: output of prepare_params."""
    batch, in_features = x.shape
    num_hidden = (len(flat) - 2) // 2
    layer_size = flat[0].shape[1]

    # ---- batch tile: multiple of 128 (lane-dense output block) and >= 4 grid
    #      steps when possible (megacore + per-core pipelining on v7x) ----
    block_rows = max(128, (block_rows // 128) * 128)
    if batch <= 128:
        tb = batch                       # single (possibly small) block
    else:
        tb = min(block_rows, max(128, _round_up(pl.cdiv(batch, 4), 128)))
    grid = (pl.cdiv(batch, tb),)         # partial last block handled by Pallas

    in_specs = [pl.BlockSpec((tb, in_features), lambda i: (i, 0))]
    for arr in flat:
        in_specs.append(pl.BlockSpec(arr.shape, lambda i: (0, 0)))  # resident in VMEM

    # ---- advisory cost estimate for XLA scheduling around the custom call ----
    flops = 2 * batch * (in_features * layer_size
                         + (num_hidden - 1) * layer_size * layer_size
                         + layer_size)
    param_bytes = sum(int(a.size) * a.dtype.itemsize for a in flat)
    bytes_accessed = int(x.size) * x.dtype.itemsize + param_bytes + batch * out_features * 4
    cost = pl.CostEstimate(flops=flops, transcendentals=batch,
                           bytes_accessed=int(bytes_accessed))

    # ---- VMEM budget: 2x resident params (every input spec is double-buffered),
    #      double-buffered x/out tiles, live activations; clamp to [32, 48] MiB ----
    x_tile = tb * in_features * x.dtype.itemsize
    out_tile = tb * out_features * 4
    act_bytes = tb * (2 * in_features + 10 * layer_size + 64)
    vmem_bytes = 2 * param_bytes + 2 * (x_tile + out_tile) + act_bytes + (4 << 20)
    vmem_bytes = int(min(max(vmem_bytes, 32 << 20), 48 << 20))

    out = pl.pallas_call(
        make_mlp_kernel(num_hidden, out_features == 2),
        out_shape=jax.ShapeDtypeStruct((out_features, batch), jnp.float32),
        grid=grid,
        in_specs=in_specs,
        out_specs=pl.BlockSpec((out_features, tb), lambda i: (0, i)),
        compiler_params=pltpu.CompilerParams(
            dimension_semantics=("parallel",),
            vmem_limit_bytes=vmem_bytes),
        cost_estimate=cost,
    )(x, *flat)
    return out.T                          # (batch, out_features), tiny XLA transpose


def init_params(key, input_size, output_size, layer_size, layer_cnt):
    """Deterministic init mirroring nn.Linear's U(-1/sqrt(fan_in), 1/sqrt(fan_in))."""
    dims = [input_size] + [layer_size] * layer_cnt + [output_size]
    params = []
    for i in range(len(dims) - 1):
        fan_in, fan_out = dims[i], dims[i + 1]
        key, kw, kb = jax.random.split(key, 3)
        bound = 1.0 / (fan_in ** 0.5)
        w = jax.random.uniform(kw, (fan_in, fan_out), jnp.float32, -bound, bound)
        b = jax.random.uniform(kb, (1, fan_out), jnp.float32, -bound, bound)
        params.append((w, b))
    return params


def reference_forward(x, params):
    """Pure-JAX reference with the same numeric recipe as the kernel:
    bf16 hidden matmuls with f32 accumulation, f32 last activation into the head."""
    h = x.astype(jnp.bfloat16)
    a = None
    for (w, b) in params[:-1]:
        y = jnp.dot(h, w.astype(jnp.bfloat16), preferred_element_type=jnp.float32) + b
        a = jnp.maximum(y, NEG_SLOPE * y)
        h = a.astype(jnp.bfloat16)
    w, b = params[-1]
    logits = jnp.dot(a, w.astype(jnp.float32), preferred_element_type=jnp.float32) + b
    if w.shape[1] == 2:
        return jax.nn.softmax(logits, axis=-1)
    return jax.nn.sigmoid(logits)


if __name__ == "__main__":
    # Small shapes consistent with the module: x is (batch, input_size).
    batch = 512          # -> tb=128, grid=4 (>= 2 steps per TensorCore on v7x)
    input_size = 32
    layer_size = 256     # module default is 512; 256 keeps the MXU K/N well fed
    layer_cnt = 4
    output_size = 2      # -> Softmax branch (output_size == 1 Sigmoid also supported)

    key = jax.random.PRNGKey(0)
    key, kx = jax.random.split(key)
    x = jax.random.normal(kx, (batch, input_size), dtype=jnp.float32)
    params = init_params(key, input_size, output_size, layer_size, layer_cnt)

    flat, out_feats = prepare_params(params)   # one-time weight conversion (cached)
    fwd = jax.jit(mlp_forward, static_argnums=(2,), static_argnames=("block_rows",))

    out = jax.block_until_ready(fwd(x, flat, out_feats))
    ref = reference_forward(x, params)

    assert out.shape == (batch, output_size)
    assert jnp.allclose(jnp.sum(out, axis=-1), 1.0, atol=1e-5), "softmax rows must sum to 1"
    assert jnp.allclose(out, ref, atol=1e-3, rtol=1e-3), (
        f"mismatch vs reference, max abs diff {float(jnp.max(jnp.abs(out - ref)))}")

    print("KERNEL_OK")
</pallas_src>

<mosaic_0001>
module attributes {stable_mosaic.version = 11 : i64} {
  func.func @kernel(%arg0: i32, %arg1: memref<128x32xf32, #tpu.memory_space<vmem>>, %arg2: memref<32x256xbf16, #tpu.memory_space<vmem>>, %arg3: memref<1x256xf32, #tpu.memory_space<vmem>>, %arg4: memref<256x256xbf16, #tpu.memory_space<vmem>>, %arg5: memref<1x256xf32, #tpu.memory_space<vmem>>, %arg6: memref<256x256xbf16, #tpu.memory_space<vmem>>, %arg7: memref<1x256xf32, #tpu.memory_space<vmem>>, %arg8: memref<256x256xbf16, #tpu.memory_space<vmem>>, %arg9: memref<1x256xf32, #tpu.memory_space<vmem>>, %arg10: memref<1x256xf32, #tpu.memory_space<vmem>>, %arg11: memref<1x1xf32, #tpu.memory_space<vmem>>, %arg12: memref<2x128xf32, #tpu.memory_space<vmem>>) attributes {dimension_semantics = [#tpu.dimension_semantics<parallel>], iteration_bounds = array<i64: 4>, scalar_prefetch = 0 : i64, scratch_operands = 0 : i64, tpu.core_type = #tpu.core_type<tc>, window_params = [{transform_indices = @transform_0, window_bounds = array<i64: 128, 32>}, {pipeline_mode = #tpu.pipeline_mode<synchronous>, transform_indices = @transform_1, window_bounds = array<i64: 32, 256>}, {pipeline_mode = #tpu.pipeline_mode<synchronous>, transform_indices = @transform_2, window_bounds = array<i64: 1, 256>}, {pipeline_mode = #tpu.pipeline_mode<synchronous>, transform_indices = @transform_3, window_bounds = array<i64: 256, 256>}, {pipeline_mode = #tpu.pipeline_mode<synchronous>, transform_indices = @transform_4, window_bounds = array<i64: 1, 256>}, {pipeline_mode = #tpu.pipeline_mode<synchronous>, transform_indices = @transform_5, window_bounds = array<i64: 256, 256>}, {pipeline_mode = #tpu.pipeline_mode<synchronous>, transform_indices = @transform_6, window_bounds = array<i64: 1, 256>}, {pipeline_mode = #tpu.pipeline_mode<synchronous>, transform_indices = @transform_7, window_bounds = array<i64: 256, 256>}, {pipeline_mode = #tpu.pipeline_mode<synchronous>, transform_indices = @transform_8, window_bounds = array<i64: 1, 256>}, {pipeline_mode = #tpu.pipeline_mode<synchronous>, transform_indices = @transform_9, window_bounds = array<i64: 1, 256>}, {pipeline_mode = #tpu.pipeline_mode<synchronous>, transform_indices = @transform_10, window_bounds = array<i64: 1, 1>}, {transform_indices = @transform_11, window_bounds = array<i64: 2, 128>}]} {
    %c0 = arith.constant 0 : index
    %c0_0 = arith.constant 0 : index
    %0 = vector.load %arg1[%c0, %c0_0] : memref<128x32xf32, #tpu.memory_space<vmem>>, vector<128x32xf32>
    %1 = arith.truncf %0 : vector<128x32xf32> to vector<128x32xbf16>
    %c0_1 = arith.constant 0 : index
    %c0_2 = arith.constant 0 : index
    %2 = vector.load %arg2[%c0_1, %c0_2] : memref<32x256xbf16, #tpu.memory_space<vmem>>, vector<32x256xbf16>
    %cst = arith.constant dense<0.000000e+00> : vector<128x256xf32>
    %3 = tpu.matmul %1, %2, %cst {dimension_numbers = #tpu.dot_dimension_numbers<[1], [0], [0], [1], [0, 0, 1, 1], [], []>} : vector<128x32xbf16>, vector<32x256xbf16>, vector<128x256xf32> -> vector<128x256xf32>
    %c0_3 = arith.constant 0 : index
    %c0_4 = arith.constant 0 : index
    %4 = vector.load %arg3[%c0_3, %c0_4] : memref<1x256xf32, #tpu.memory_space<vmem>>, vector<1x256xf32>
    %5 = vector.broadcast %4 : vector<1x256xf32> to vector<128x256xf32>
    %6 = arith.addf %3, %5 : vector<128x256xf32>
    %cst_5 = arith.constant 0.00999999977 : f32
    %7 = vector.broadcast %cst_5 : f32 to vector<128x256xf32>
    %8 = arith.mulf %7, %6 : vector<128x256xf32>
    %9 = arith.maximumf %6, %8 : vector<128x256xf32>
    %10 = arith.truncf %9 : vector<128x256xf32> to vector<128x256xbf16>
    %c0_6 = arith.constant 0 : index
    %c0_7 = arith.constant 0 : index
    %11 = vector.load %arg4[%c0_6, %c0_7] : memref<256x256xbf16, #tpu.memory_space<vmem>>, vector<256x256xbf16>
    %cst_8 = arith.constant dense<0.000000e+00> : vector<128x256xf32>
    %12 = tpu.matmul %10, %11, %cst_8 {dimension_numbers = #tpu.dot_dimension_numbers<[1], [0], [0], [1], [0, 0, 1, 1], [], []>} : vector<128x256xbf16>, vector<256x256xbf16>, vector<128x256xf32> -> vector<128x256xf32>
    %c0_9 = arith.constant 0 : index
    %c0_10 = arith.constant 0 : index
    %13 = vector.load %arg5[%c0_9, %c0_10] : memref<1x256xf32, #tpu.memory_space<vmem>>, vector<1x256xf32>
    %14 = vector.broadcast %13 : vector<1x256xf32> to vector<128x256xf32>
    %15 = arith.addf %12, %14 : vector<128x256xf32>
    %cst_11 = arith.constant 0.00999999977 : f32
    %16 = vector.broadcast %cst_11 : f32 to vector<128x256xf32>
    %17 = arith.mulf %16, %15 : vector<128x256xf32>
    %18 = arith.maximumf %15, %17 : vector<128x256xf32>
    %19 = arith.truncf %18 : vector<128x256xf32> to vector<128x256xbf16>
    %c0_12 = arith.constant 0 : index
    %c0_13 = arith.constant 0 : index
    %20 = vector.load %arg6[%c0_12, %c0_13] : memref<256x256xbf16, #tpu.memory_space<vmem>>, vector<256x256xbf16>
    %cst_14 = arith.constant dense<0.000000e+00> : vector<128x256xf32>
    %21 = tpu.matmul %19, %20, %cst_14 {dimension_numbers = #tpu.dot_dimension_numbers<[1], [0], [0], [1], [0, 0, 1, 1], [], []>} : vector<128x256xbf16>, vector<256x256xbf16>, vector<128x256xf32> -> vector<128x256xf32>
    %c0_15 = arith.constant 0 : index
    %c0_16 = arith.constant 0 : index
    %22 = vector.load %arg7[%c0_15, %c0_16] : memref<1x256xf32, #tpu.memory_space<vmem>>, vector<1x256xf32>
    %23 = vector.broadcast %22 : vector<1x256xf32> to vector<128x256xf32>
    %24 = arith.addf %21, %23 : vector<128x256xf32>
    %cst_17 = arith.constant 0.00999999977 : f32
    %25 = vector.broadcast %cst_17 : f32 to vector<128x256xf32>
    %26 = arith.mulf %25, %24 : vector<128x256xf32>
    %27 = arith.maximumf %24, %26 : vector<128x256xf32>
    %28 = arith.truncf %27 : vector<128x256xf32> to vector<128x256xbf16>
    %c0_18 = arith.constant 0 : index
    %c0_19 = arith.constant 0 : index
    %29 = vector.load %arg8[%c0_18, %c0_19] : memref<256x256xbf16, #tpu.memory_space<vmem>>, vector<256x256xbf16>
    %cst_20 = arith.constant dense<0.000000e+00> : vector<128x256xf32>
    %30 = tpu.matmul %28, %29, %cst_20 {dimension_numbers = #tpu.dot_dimension_numbers<[1], [0], [0], [1], [0, 0, 1, 1], [], []>} : vector<128x256xbf16>, vector<256x256xbf16>, vector<128x256xf32> -> vector<128x256xf32>
    %c0_21 = arith.constant 0 : index
    %c0_22 = arith.constant 0 : index
    %31 = vector.load %arg9[%c0_21, %c0_22] : memref<1x256xf32, #tpu.memory_space<vmem>>, vector<1x256xf32>
    %32 = vector.broadcast %31 : vector<1x256xf32> to vector<128x256xf32>
    %33 = arith.addf %30, %32 : vector<128x256xf32>
    %cst_23 = arith.constant 0.00999999977 : f32
    %34 = vector.broadcast %cst_23 : f32 to vector<128x256xf32>
    %35 = arith.mulf %34, %33 : vector<128x256xf32>
    %36 = arith.maximumf %33, %35 : vector<128x256xf32>
    %c0_24 = arith.constant 0 : index
    %c0_25 = arith.constant 0 : index
    %37 = vector.load %arg10[%c0_24, %c0_25] : memref<1x256xf32, #tpu.memory_space<vmem>>, vector<1x256xf32>
    "tpu.trace_start"() <{level = 10 : i32, message = "ol,bl->ob"}> : () -> ()
    %cst_26 = arith.constant dense<0.000000e+00> : vector<1x128xf32>
    %38 = tpu.matmul %37, %36, %cst_26 {dimension_numbers = #tpu.dot_dimension_numbers<[1], [1], [0], [0], [0, 0, 1, 0], [], []>} : vector<1x256xf32>, vector<128x256xf32>, vector<1x128xf32> -> vector<1x128xf32>
    "tpu.trace_stop"() : () -> ()
    %c0_27 = arith.constant 0 : index
    %c0_28 = arith.constant 0 : index
    %39 = vector.load %arg11[%c0_27, %c0_28] : memref<1x1xf32, #tpu.memory_space<vmem>>, vector<1x1xf32>
    %40 = vector.broadcast %39 : vector<1x1xf32> to vector<1x128xf32>
    %41 = arith.addf %38, %40 : vector<1x128xf32>
    %cst_29 = arith.constant 0.000000e+00 : f32
    %42 = vector.broadcast %cst_29 : f32 to vector<1x128xf32>
    %43 = arith.subf %42, %41 : vector<1x128xf32>
    %44 = math.exp %43 : vector<1x128xf32>
    %cst_30 = arith.constant 1.000000e+00 : f32
    %45 = vector.broadcast %cst_30 : f32 to vector<1x128xf32>
    %46 = arith.addf %45, %44 : vector<1x128xf32>
    %cst_31 = arith.constant 1.000000e+00 : f32
    %47 = vector.broadcast %cst_31 : f32 to vector<1x128xf32>
    %48 = arith.divf %47, %46 : vector<1x128xf32>
    %49 = tpu.iota {dimensions = array<i32: 0>} : vector<2x128xi32>
    %c1_i32 = arith.constant 1 : i32
    %50 = vector.broadcast %c1_i32 : i32 to vector<2x128xi32>
    %51 = arith.cmpi eq, %49, %50 : vector<2x128xi32>
    %cst_32 = arith.constant 1.000000e+00 : f32
    %52 = vector.broadcast %cst_32 : f32 to vector<1x128xf32>
    %53 = arith.subf %52, %48 : vector<1x128xf32>
    %54 = vector.shape_cast %48 : vector<1x128xf32> to vector<1x128xf32>
    %55 = vector.broadcast %54 : vector<1x128xf32> to vector<2x128xf32>
    %56 = vector.shape_cast %53 : vector<1x128xf32> to vector<1x128xf32>
    %57 = vector.broadcast %56 : vector<1x128xf32> to vector<2x128xf32>
    %58 = arith.select %51, %55, %57 : vector<2x128xi1>, vector<2x128xf32>
    %c0_33 = arith.constant 0 : index
    %c0_34 = arith.constant 0 : index
    %59 = vector.load %arg12[%c0_33, %c0_34] : memref<2x128xf32, #tpu.memory_space<vmem>>, vector<2x128xf32>
    tpu.vector_store %arg12[%c0_33, %c0_34], %58 {strides = array<i32>} : memref<2x128xf32, #tpu.memory_space<vmem>>, vector<2x128xf32>,
    return
  }
  func.func @transform_0(%arg0: i32) -> (i32, i32) {
    %c0_i32 = arith.constant 0 : i32
    %c0_i32_0 = arith.constant 0 : i32
    return %arg0, %c0_i32 : i32, i32
  }
  func.func @transform_1(%arg0: i32) -> (i32, i32) {
    %c0_i32 = arith.constant 0 : i32
    %c0_i32_0 = arith.constant 0 : i32
    %c0_i32_1 = arith.constant 0 : i32
    return %c0_i32, %c0_i32_0 : i32, i32
  }
  func.func @transform_2(%arg0: i32) -> (i32, i32) {
    %c0_i32 = arith.constant 0 : i32
    %c0_i32_0 = arith.constant 0 : i32
    %c0_i32_1 = arith.constant 0 : i32
    return %c0_i32, %c0_i32_0 : i32, i32
  }
  func.func @transform_3(%arg0: i32) -> (i32, i32) {
    %c0_i32 = arith.constant 0 : i32
    %c0_i32_0 = arith.constant 0 : i32
    %c0_i32_1 = arith.constant 0 : i32
    return %c0_i32, %c0_i32_0 : i32, i32
  }
  func.func @transform_4(%arg0: i32) -> (i32, i32) {
    %c0_i32 = arith.constant 0 : i32
    %c0_i32_0 = arith.constant 0 : i32
    %c0_i32_1 = arith.constant 0 : i32
    return %c0_i32, %c0_i32_0 : i32, i32
  }
  func.func @transform_5(%arg0: i32) -> (i32, i32) {
    %c0_i32 = arith.constant 0 : i32
    %c0_i32_0 = arith.constant 0 : i32
    %c0_i32_1 = arith.constant 0 : i32
    return %c0_i32, %c0_i32_0 : i32, i32
  }
  func.func @transform_6(%arg0: i32) -> (i32, i32) {
    %c0_i32 = arith.constant 0 : i32
    %c0_i32_0 = arith.constant 0 : i32
    %c0_i32_1 = arith.constant 0 : i32
    return %c0_i32, %c0_i32_0 : i32, i32
  }
  func.func @transform_7(%arg0: i32) -> (i32, i32) {
    %c0_i32 = arith.constant 0 : i32
    %c0_i32_0 = arith.constant 0 : i32
    %c0_i32_1 = arith.constant 0 : i32
    return %c0_i32, %c0_i32_0 : i32, i32
  }
  func.func @transform_8(%arg0: i32) -> (i32, i32) {
    %c0_i32 = arith.constant 0 : i32
    %c0_i32_0 = arith.constant 0 : i32
    %c0_i32_1 = arith.constant 0 : i32
    return %c0_i32, %c0_i32_0 : i32, i32
  }
  func.func @transform_9(%arg0: i32) -> (i32, i32) {
    %c0_i32 = arith.constant 0 : i32
    %c0_i32_0 = arith.constant 0 : i32
    %c0_i32_1 = arith.constant 0 : i32
    return %c0_i32, %c0_i32_0 : i32, i32
  }
  func.func @transform_10(%arg0: i32) -> (i32, i32) {
    %c0_i32 = arith.constant 0 : i32
    %c0_i32_0 = arith.constant 0 : i32
    %c0_i32_1 = arith.constant 0 : i32
    return %c0_i32, %c0_i32_0 : i32, i32
  }
  func.func @transform_11(%arg0: i32) -> (i32, i32) {
    %c0_i32 = arith.constant 0 : i32
    %c0_i32_0 = arith.constant 0 : i32
    return %c0_i32, %arg0 : i32, i32
  }
}

</mosaic_0001>

<llo_original>
// kernel: mlp_forward.1
$region0: #{mlp_forward.1}
  #allocation0 [shape = 'u32[]', space=smem, size = 0x4, offset = 0x4, fixed_abs, tag = 'smem constant byte address 0x4 - core index']
  #allocation1 [shape = 'u32[144,128]{1,0:T(1,128)}', space=vmem, size = 0x12000, scoped, tag = 'internal scratch']
  #allocation2 [shape = 'f32[1,1]{1,0:T(1,128)S(1)}', space=vmem, size = 0x200, scoped, tag = 'scoped memory for mlp_forward.1']
  %s0 = inlined_call_operand.vmem [shape: f32[512,32], index: 0, kind: input, shape index: {}]
  %s1 = inlined_call_operand.vmem [shape: bf16[32,256], index: 1, kind: input, shape index: {}]
  %s2 = inlined_call_operand.vmem [shape: f32[1,256], index: 2, kind: input, shape index: {}]
  %s3 = inlined_call_operand.vmem [shape: bf16[256,256], index: 3, kind: input, shape index: {}]
  %s4 = inlined_call_operand.vmem [shape: f32[1,256], index: 4, kind: input, shape index: {}]
  %s5 = inlined_call_operand.vmem [shape: bf16[256,256], index: 5, kind: input, shape index: {}]
  %s6 = inlined_call_operand.vmem [shape: f32[1,256], index: 6, kind: input, shape index: {}]
  %s7 = inlined_call_operand.hbm [shape: bf16[256,256], index: 7, kind: input, shape index: {}]
  %s8 = inlined_call_operand.vmem [shape: f32[1,256], index: 8, kind: input, shape index: {}]
  %s9 = inlined_call_operand.vmem [shape: f32[1,256], index: 9, kind: input, shape index: {}]
  %s10 = inlined_call_operand.<no memory space> [shape: f32[1,1], index: 10, kind: input, shape index: {}]
  %s11 = inlined_call_operand.hbm [shape: f32[2,512], index: 11, kind: output, shape index: {}]
  %s12 = sld [smem:[#allocation0]]
  $region81: #{mlp_forward.1} parent=0
    _
  %s14 = ssub.s32 1, %s12
  %s15 = scalar_select 0, %s14, %s12
  %v16 = vstv %s10
  %17 = vst [vmem:[#allocation2] sm:$0x1] %v16
  $region1: #{mlp_forward.1} parent=0
    #allocation3 [shape = 'u8[131072]{0}', space=vmem, size = 0x20000, scoped, tag = 'input window, operand 7, single buffered']
    #allocation4 [shape = 's32[2]{0}', space=sflag, size = 0x8, scoped, tag = 'scoped memory for mlp_forward.1']
    #allocation5 [shape = 's32[2]{0}', space=sflag, size = 0x8, scoped, tag = 'scoped memory for mlp_forward.1']
    #allocation6 [shape = 'u8[2048]{0}', space=vmem, size = 0x800, scoped, tag = 'output window, operand 0']
    %18 = vsyncpa [#allocation4], 0
    %19 = vsyncpa [#allocation5], 0
    %s20 = scalar_lea.sflag [#allocation5], 1
    %21 = vsyncpa %s20, 0
    loop: start=0, step=1, limit=6
    $region2: #{mlp_forward.1} parent=1 // loop_pre_header
      _
    $region3: #{mlp_forward.1} parent=1 // loop_header
      %s23 = sphi 0, %s27
      %p24 = scmp.ge.s32.totalorder %s23, 6
      %s33 = sphi 0, %s35
      %s36 = sphi 0, %s33
      %s37 = sphi 0, %s36
      %s53 = sphi 0, %s37
      %s57 = sphi 0, %s57
      %s59 = sphi 0, %s57
      %s60 = sphi 0, %s59
      %s74 = sphi 0, %s60
      %s78 = sphi 0, %s78
      %s80 = sphi 0, %s78
      %s81 = sphi 0, %s80
      %s95 = sphi 0, %s81
      %s99 = sphi 0, %s99
      %s101 = sphi 0, %s99
      %s102 = sphi 0, %s101
      %s116 = sphi 0, %s102
      %s120 = sphi 0, %s120
      %s122 = sphi 0, %s120
      %s123 = sphi 0, %s122
      %s137 = sphi 0, %s123
      %s141 = sphi 0, %s141
      %s143 = sphi 0, %s141
      %s144 = sphi 0, %s143
      %s158 = sphi 0, %s144
      %s162 = sphi 0, %s162
      %s164 = sphi 0, %s162
      %s165 = sphi 0, %s164
      %s179 = sphi 0, %s165
      %s183 = sphi 0, %s183
      %s185 = sphi 0, %s183
      %s186 = sphi 0, %s185
      %s200 = sphi 0, %s186
      %s204 = sphi 0, %s204
      %s206 = sphi 0, %s204
      %s207 = sphi 0, %s206
      %s221 = sphi 0, %s207
      %s225 = sphi 0, %s225
      %s227 = sphi 0, %s225
      %s228 = sphi 0, %s227
      %s242 = sphi 0, %s228
      %s246 = sphi 0, %s246
      %s248 = sphi 0, %s246
      %s249 = sphi 0, %s248
      %s263 = sphi 0, %s249
      %s269 = sphi 0, %s271
      %s272 = sphi 0, %s269
      %s273 = sphi 0, %s272
      %s289 = sphi 0, %s273
    $region4: #{mlp_forward.1} parent=1 // loop_header_branch
      %26 = sbr.rel (%p24) target = $region8
    $region5: #{mlp_forward.1} parent=1 // loop_body
      %s28 = ssub.s32 %s23, 1
      %s29 = ssub.s32 %s23, 2
      %s30 = sadd.s32 %s23, 1
      %s31 = ssub.s32 %s23, %s30
      %p32 = scmp.eq.s32.totalorder %s31, 0
      %s34 = sadd.s32 %s33, 1
      %s35 = scalar_select %p32, %s33, %s34
      %p38 = pneg %p32
      %p39 = scmp.eq.s32.totalorder %s23, 3
      %p40 = por %p38, %p39
      %p41 = scmp.ne.s32.totalorder %s33, %s36
      %p42 = scmp.eq.s32.totalorder %s23, 0
      %p43 = por %p41, %p42
      %p44 = scmp.ne.s32.totalorder %s33, %s36
      %p45 = scmp.eq.s32.totalorder %s28, 3
      %p46 = por %p44, %p45
      %p47 = scmp.ne.s32.totalorder %s36, %s37
      %p48 = scmp.eq.s32.totalorder %s28, 0
      %p49 = por %p47, %p48
      %p50 = scmp.ne.s32.totalorder %s36, %s37
      %p51 = scmp.eq.s32.totalorder %s29, 3
      %p52 = por %p50, %p51
      %p54 = scmp.ne.s32.totalorder %s37, %s53
      %p55 = scmp.eq.s32.totalorder %s29, 0
      %p56 = por %p54, %p55
      %s58 = sadd.s32 %s57, 1
      %p61 = scmp.eq.s32.totalorder %s23, 3
      %p62 = scmp.ne.s32.totalorder %s57, %s59
      %p63 = scmp.eq.s32.totalorder %s23, 0
      %p64 = por %p62, %p63
      %p65 = scmp.ne.s32.totalorder %s57, %s59
      %p66 = scmp.eq.s32.totalorder %s28, 3
      %p67 = por %p65, %p66
      %p68 = scmp.ne.s32.totalorder %s59, %s60
      %p69 = scmp.eq.s32.totalorder %s28, 0
      %p70 = por %p68, %p69
      %p71 = scmp.ne.s32.totalorder %s59, %s60
      %p72 = scmp.eq.s32.totalorder %s29, 3
      %p73 = por %p71, %p72
      %p75 = scmp.ne.s32.totalorder %s60, %s74
      %p76 = scmp.eq.s32.totalorder %s29, 0
      %p77 = por %p75, %p76
      %s79 = sadd.s32 %s78, 1
      %p82 = scmp.eq.s32.totalorder %s23, 3
      %p83 = scmp.ne.s32.totalorder %s78, %s80
      %p84 = scmp.eq.s32.totalorder %s23, 0
      %p85 = por %p83, %p84
      %p86 = scmp.ne.s32.totalorder %s78, %s80
      %p87 = scmp.eq.s32.totalorder %s28, 3
      %p88 = por %p86, %p87
      %p89 = scmp.ne.s32.totalorder %s80, %s81
      %p90 = scmp.eq.s32.totalorder %s28, 0
      %p91 = por %p89, %p90
      %p92 = scmp.ne.s32.totalorder %s80, %s81
      %p93 = scmp.eq.s32.totalorder %s29, 3
      %p94 = por %p92, %p93
      %p96 = scmp.ne.s32.totalorder %s81, %s95
      %p97 = scmp.eq.s32.totalorder %s29, 0
      %p98 = por %p96, %p97
      %s100 = sadd.s32 %s99, 1
      %p103 = scmp.eq.s32.totalorder %s23, 3
      %p104 = scmp.ne.s32.totalorder %s99, %s101
      %p105 = scmp.eq.s32.totalorder %s23, 0
      %p106 = por %p104, %p105
      %p107 = scmp.ne.s32.totalorder %s99, %s101
      %p108 = scmp.eq.s32.totalorder %s28, 3
      %p109 = por %p107, %p108
      %p110 = scmp.ne.s32.totalorder %s101, %s102
      %p111 = scmp.eq.s32.totalorder %s28, 0
      %p112 = por %p110, %p111
      %p113 = scmp.ne.s32.totalorder %s101, %s102
      %p114 = scmp.eq.s32.totalorder %s29, 3
      %p115 = por %p113, %p114
      %p117 = scmp.ne.s32.totalorder %s102, %s116
      %p118 = scmp.eq.s32.totalorder %s29, 0
      %p119 = por %p117, %p118
      %s121 = sadd.s32 %s120, 1
      %p124 = scmp.eq.s32.totalorder %s23, 3
      %p125 = scmp.ne.s32.totalorder %s120, %s122
      %p126 = scmp.eq.s32.totalorder %s23, 0
      %p127 = por %p125, %p126
      %p128 = scmp.ne.s32.totalorder %s120, %s122
      %p129 = scmp.eq.s32.totalorder %s28, 3
      %p130 = por %p128, %p129
      %p131 = scmp.ne.s32.totalorder %s122, %s123
      %p132 = scmp.eq.s32.totalorder %s28, 0
      %p133 = por %p131, %p132
      %p134 = scmp.ne.s32.totalorder %s122, %s123
      %p135 = scmp.eq.s32.totalorder %s29, 3
      %p136 = por %p134, %p135
      %p138 = scmp.ne.s32.totalorder %s123, %s137
      %p139 = scmp.eq.s32.totalorder %s29, 0
      %p140 = por %p138, %p139
      %s142 = sadd.s32 %s141, 1
      %p145 = scmp.eq.s32.totalorder %s23, 3
      %p146 = scmp.ne.s32.totalorder %s141, %s143
      %p147 = scmp.eq.s32.totalorder %s23, 0
      %p148 = por %p146, %p147
      %p149 = scmp.ne.s32.totalorder %s141, %s143
      %p150 = scmp.eq.s32.totalorder %s28, 3
      %p151 = por %p149, %p150
      %p152 = scmp.ne.s32.totalorder %s143, %s144
      %p153 = scmp.eq.s32.totalorder %s28, 0
      %p154 = por %p152, %p153
      %p155 = scmp.ne.s32.totalorder %s143, %s144
      %p156 = scmp.eq.s32.totalorder %s29, 3
      %p157 = por %p155, %p156
      %p159 = scmp.ne.s32.totalorder %s144, %s158
      %p160 = scmp.eq.s32.totalorder %s29, 0
      %p161 = por %p159, %p160
      %s163 = sadd.s32 %s162, 1
      %p166 = scmp.eq.s32.totalorder %s23, 3
      %p167 = scmp.ne.s32.totalorder %s162, %s164
      %p168 = scmp.eq.s32.totalorder %s23, 0
      %p169 = por %p167, %p168
      %p170 = scmp.ne.s32.totalorder %s162, %s164
      %p171 = scmp.eq.s32.totalorder %s28, 3
      %p172 = por %p170, %p171
      %p173 = scmp.ne.s32.totalorder %s164, %s165
      %p174 = scmp.eq.s32.totalorder %s28, 0
      %p175 = por %p173, %p174
      %p176 = scmp.ne.s32.totalorder %s164, %s165
      %p177 = scmp.eq.s32.totalorder %s29, 3
      %p178 = por %p176, %p177
      %p180 = scmp.ne.s32.totalorder %s165, %s179
      %p181 = scmp.eq.s32.totalorder %s29, 0
      %p182 = por %p180, %p181
      %s184 = sadd.s32 %s183, 1
      %p187 = scmp.eq.s32.totalorder %s23, 3
      %p188 = scmp.ne.s32.totalorder %s183, %s185
      %p189 = scmp.eq.s32.totalorder %s23, 0
      %p190 = por %p188, %p189
      %p191 = scmp.ne.s32.totalorder %s183, %s185
      %p192 = scmp.eq.s32.totalorder %s28, 3
      %p193 = por %p191, %p192
      %p194 = scmp.ne.s32.totalorder %s185, %s186
      %p195 = scmp.eq.s32.totalorder %s28, 0
      %p196 = por %p194, %p195
      %p197 = scmp.ne.s32.totalorder %s185, %s186
      %p198 = scmp.eq.s32.totalorder %s29, 3
      %p199 = por %p197, %p198
      %p201 = scmp.ne.s32.totalorder %s186, %s200
      %p202 = scmp.eq.s32.totalorder %s29, 0
      %p203 = por %p201, %p202
      %s205 = sadd.s32 %s204, 1
      %p208 = scmp.eq.s32.totalorder %s23, 3
      %p209 = scmp.ne.s32.totalorder %s204, %s206
      %p210 = scmp.eq.s32.totalorder %s23, 0
      %p211 = por %p209, %p210
      %p212 = scmp.ne.s32.totalorder %s204, %s206
      %p213 = scmp.eq.s32.totalorder %s28, 3
      %p214 = por %p212, %p213
      %p215 = scmp.ne.s32.totalorder %s206, %s207
      %p216 = scmp.eq.s32.totalorder %s28, 0
      %p217 = por %p215, %p216
      %p218 = scmp.ne.s32.totalorder %s206, %s207
      %p219 = scmp.eq.s32.totalorder %s29, 3
      %p220 = por %p218, %p219
      %p222 = scmp.ne.s32.totalorder %s207, %s221
      %p223 = scmp.eq.s32.totalorder %s29, 0
      %p224 = por %p222, %p223
      %s226 = sadd.s32 %s225, 1
      %p229 = scmp.eq.s32.totalorder %s23, 3
      %p230 = scmp.ne.s32.totalorder %s225, %s227
      %p231 = scmp.eq.s32.totalorder %s23, 0
      %p232 = por %p230, %p231
      %p233 = scmp.ne.s32.totalorder %s225, %s227
      %p234 = scmp.eq.s32.totalorder %s28, 3
      %p235 = por %p233, %p234
      %p236 = scmp.ne.s32.totalorder %s227, %s228
      %p237 = scmp.eq.s32.totalorder %s28, 0
      %p238 = por %p236, %p237
      %p239 = scmp.ne.s32.totalorder %s227, %s228
      %p240 = scmp.eq.s32.totalorder %s29, 3
      %p241 = por %p239, %p240
      %p243 = scmp.ne.s32.totalorder %s228, %s242
      %p244 = scmp.eq.s32.totalorder %s29, 0
      %p245 = por %p243, %p244
      %s247 = sadd.s32 %s246, 1
      %p250 = scmp.eq.s32.totalorder %s23, 3
      %p251 = scmp.ne.s32.totalorder %s246, %s248
      %p252 = scmp.eq.s32.totalorder %s23, 0
      %p253 = por %p251, %p252
      %p254 = scmp.ne.s32.totalorder %s246, %s248
      %p255 = scmp.eq.s32.totalorder %s28, 3
      %p256 = por %p254, %p255
      %p257 = scmp.ne.s32.totalorder %s248, %s249
      %p258 = scmp.eq.s32.totalorder %s28, 0
      %p259 = por %p257, %p258
      %p260 = scmp.ne.s32.totalorder %s248, %s249
      %p261 = scmp.eq.s32.totalorder %s29, 3
      %p262 = por %p260, %p261
      %p264 = scmp.ne.s32.totalorder %s249, %s263
      %p265 = scmp.eq.s32.totalorder %s29, 0
      %p266 = por %p264, %p265
      %s267 = ssub.s32 %s23, %s30
      %p268 = scmp.eq.s32.totalorder %s267, 0
      %s270 = sadd.s32 %s269, 1
      %s271 = scalar_select %p268, %s269, %s270
      %p274 = pneg %p268
      %p275 = scmp.eq.s32.totalorder %s23, 3
      %p276 = por %p274, %p275
      %p277 = scmp.ne.s32.totalorder %s269, %s272
      %p278 = scmp.eq.s32.totalorder %s23, 0
      %p279 = por %p277, %p278
      %p280 = scmp.ne.s32.totalorder %s269, %s272
      %p281 = scmp.eq.s32.totalorder %s28, 3
      %p282 = por %p280, %p281
      %p283 = scmp.ne.s32.totalorder %s272, %s273
      %p284 = scmp.eq.s32.totalorder %s28, 0
      %p285 = por %p283, %p284
      %p286 = scmp.ne.s32.totalorder %s272, %s273
      %p287 = scmp.eq.s32.totalorder %s29, 3
      %p288 = por %p286, %p287
      %p290 = scmp.ne.s32.totalorder %s273, %s289
      %p291 = scmp.eq.s32.totalorder %s29, 0
      %p292 = por %p290, %p291
      %p293 = scmp.le.s32.totalorder 1, %s23
      %p294 = scmp.lt.s32.totalorder %s23, 5
      %p295 = pnand %p293, %p294
      %p296 = pneg %p295
      // Predicated region
      $region9: #{mlp_forward.1} parent=5 // pred_check
        _
      $region10: #{mlp_forward.1} parent=5 // pred_check_branch
        %298 = sbr.rel (%p295) target = $region12
      $region11: #{mlp_forward.1} parent=5 // pred_region
        %s299 = ssub.s32 %s23, 1
        // Predicated region
        $region13: #{mlp_forward.1} parent=11 // pred_check
          %p300 = pneg %p70
        $region14: #{mlp_forward.1} parent=11 // pred_check_branch
          %302 = sbr.rel (%p300) target = $region16
        $region15: #{mlp_forward.1} parent=11 // pred_region
          _
        $region16: #{mlp_forward.1} parent=11 // pred_fallthru
          _
        // Predicated region
        $region17: #{mlp_forward.1} parent=11 // pred_check
          %p303 = pneg %p91
        $region18: #{mlp_forward.1} parent=11 // pred_check_branch
          %305 = sbr.rel (%p303) target = $region20
        $region19: #{mlp_forward.1} parent=11 // pred_region
          _
        $region20: #{mlp_forward.1} parent=11 // pred_fallthru
          _
        // Predicated region
        $region21: #{mlp_forward.1} parent=11 // pred_check
          %p306 = pneg %p112
        $region22: #{mlp_forward.1} parent=11 // pred_check_branch
          %308 = sbr.rel (%p306) target = $region24
        $region23: #{mlp_forward.1} parent=11 // pred_region
          _
        $region24: #{mlp_forward.1} parent=11 // pred_fallthru
          _
        // Predicated region
        $region25: #{mlp_forward.1} parent=11 // pred_check
          %p309 = pneg %p133
        $region26: #{mlp_forward.1} parent=11 // pred_check_branch
          %311 = sbr.rel (%p309) target = $region28
        $region27: #{mlp_forward.1} parent=11 // pred_region
          _
        $region28: #{mlp_forward.1} parent=11 // pred_fallthru
          _
        // Predicated region
        $region29: #{mlp_forward.1} parent=11 // pred_check
          %p312 = pneg %p154
        $region30: #{mlp_forward.1} parent=11 // pred_check_branch
          %314 = sbr.rel (%p312) target = $region32
        $region31: #{mlp_forward.1} parent=11 // pred_region
          _
        $region32: #{mlp_forward.1} parent=11 // pred_fallthru
          _
        // Predicated region
        $region33: #{mlp_forward.1} parent=11 // pred_check
          %p315 = pneg %p175
        $region34: #{mlp_forward.1} parent=11 // pred_check_branch
          %317 = sbr.rel (%p315) target = $region36
        $region35: #{mlp_forward.1} parent=11 // pred_region
          _
        $region36: #{mlp_forward.1} parent=11 // pred_fallthru
          _
        // Predicated region
        $region37: #{mlp_forward.1} parent=11 // pred_check
          %p318 = pneg %p196
        $region38: #{mlp_forward.1} parent=11 // pred_check_branch
          %320 = sbr.rel (%p318) target = $region40
        $region39: #{mlp_forward.1} parent=11 // pred_region
          %s322 = ssub.s32 4096, 4096
          %323 = vsyncadd [#allocation4], %s322
          %s324 = sshll.u32 [#allocation3], 4
          %s325 = int_to_ptr.vmem [resolvable:$true] %s324
          %330 = dma.hbm_to_vmem [thread:$0]  %s7, 4096, %s325, [#allocation4], 128, 128, 8
        $region40: #{mlp_forward.1} parent=11 // pred_fallthru
          _
        // Predicated region
        $region41: #{mlp_forward.1} parent=11 // pred_check
          %p331 = pneg %p217
        $region42: #{mlp_forward.1} parent=11 // pred_check_branch
          %333 = sbr.rel (%p331) target = $region44
        $region43: #{mlp_forward.1} parent=11 // pred_region
          _
        $region44: #{mlp_forward.1} parent=11 // pred_fallthru
          _
        // Predicated region
        $region45: #{mlp_forward.1} parent=11 // pred_check
          %p334 = pneg %p238
        $region46: #{mlp_forward.1} parent=11 // pred_check_branch
          %336 = sbr.rel (%p334) target = $region48
        $region47: #{mlp_forward.1} parent=11 // pred_region
          _
        $region48: #{mlp_forward.1} parent=11 // pred_fallthru
          _
        // Predicated region
        $region49: #{mlp_forward.1} parent=11 // pred_check
          %p337 = pneg %p259
        $region50: #{mlp_forward.1} parent=11 // pred_check_branch
          %339 = sbr.rel (%p337) target = $region52
        $region51: #{mlp_forward.1} parent=11 // pred_region
          _
        $region52: #{mlp_forward.1} parent=11 // pred_fallthru
          _
      $region12: #{mlp_forward.1} parent=5 // pred_fallthru
        _
      %p340 = scmp.lt.s32.totalorder %s23, 4
      // Predicated region
      $region53: #{mlp_forward.1} parent=5 // pred_check
        %p341 = pneg %p340
      $region54: #{mlp_forward.1} parent=5 // pred_check_branch
        %343 = sbr.rel (%p341) target = $region56
      $region55: #{mlp_forward.1} parent=5 // pred_region
        // Predicated region
        $region57: #{mlp_forward.1} parent=55 // pred_check
          %p344 = pneg %p43
        $region58: #{mlp_forward.1} parent=55 // pred_check_branch
          %346 = sbr.rel (%p344) target = $region60
        $region59: #{mlp_forward.1} parent=55 // pred_region
          %s347 = smul.u32 16, %s23
          %p348 = scmp.lt.s32.totalorder %s347, 63
          %s349 = scalar_select %p348, %s347, 63
          %s350 = smul.addr %s349, 8
          %s351 = scalar_lea.vmem %s0, %s350
          %s352 = smul.u32 16, %s23
        $region60: #{mlp_forward.1} parent=55 // pred_fallthru
          _
      $region56: #{mlp_forward.1} parent=5 // pred_fallthru
        _
      %p353 = scmp.le.s32.totalorder 1, %s23
      %p354 = scmp.lt.s32.totalorder %s23, 5
      %p355 = pnand %p353, %p354
      %p356 = pneg %p355
      // Predicated region
      $region61: #{mlp_forward.1} parent=5 // pred_check
        _
      $region62: #{mlp_forward.1} parent=5 // pred_check_branch
        %358 = sbr.rel (%p355) target = $region64
      $region63: #{mlp_forward.1} parent=5 // pred_region
        %s359 = ssub.s32 %s23, 1
        // Predicated region
        $region65: #{mlp_forward.1} parent=63 // pred_check
          %p360 = pneg %p196
        $region66: #{mlp_forward.1} parent=63 // pred_check_branch
          %362 = sbr.rel (%p360) target = $region68
        $region67: #{mlp_forward.1} parent=63 // pred_region
          %363 = dma.done [#allocation4], 4096
        $region68: #{mlp_forward.1} parent=63 // pred_fallthru
          _
        %s364 = smul.u32 16, %s28
        %p365 = scmp.lt.s32.totalorder %s364, 63
        %s366 = scalar_select %p365, %s364, 63
        %s367 = smul.addr %s366, 8
        %s368 = scalar_lea.vmem %s0, %s367
        %p369 = pneg %p49
        %p370 = pneg %p46
        %p371 = pneg %p70
        %p372 = pneg %p67
        %p373 = pneg %p91
        %p374 = pneg %p88
        %p375 = pneg %p112
        %p376 = pneg %p109
        %p377 = pneg %p133
        %p378 = pneg %p130
        %p379 = pneg %p154
        %p380 = pneg %p151
        %p381 = pneg %p175
        %p382 = pneg %p172
        %p383 = pneg %p196
        %p384 = pneg %p193
        %p385 = pneg %p217
        %p386 = pneg %p214
        %p387 = pneg %p238
        %p388 = pneg %p235
        %p389 = pneg %p259
        %p390 = pneg %p256
        %p391 = pneg %p285
        %p392 = pneg %p282
        %s393 = sand.u32 %s272, 1
        %s394 = scalar_lea.sflag [#allocation5], %s393
        %s395 = sand.u32 %s272, 1
        %s396 = smul.addr %s395, 2
        %s397 = scalar_lea.vmem [#allocation6], %s396
        %s398 = smul.u32 16, %s28
        %p399 = scmp.lt.s32.totalorder %s398, 63
        %s400 = scalar_select %p399, %s398, 63
        %s401 = smul.addr %s400, 8
        %s402 = scalar_lea.vmem %s0, %s401
        %s403 = smul.u32 16, %s28
        %v405 = vld [vmem:[%s402] sm:$0xff]
        %v406 = vld [vmem:[%s402 + $0x8] sm:$0xff]
        %v407 = vld [vmem:[%s402 + $0x10] sm:$0xff]
        %v408 = vld [vmem:[%s402 + $0x18] sm:$0xff]
        %v409 = vld [vmem:[%s402 + $0x20] sm:$0xff]
        %v410 = vld [vmem:[%s402 + $0x28] sm:$0xff]
        %v411 = vld [vmem:[%s402 + $0x30] sm:$0xff]
        %v412 = vld [vmem:[%s402 + $0x38] sm:$0xff]
        %v413 = vld [vmem:[%s402 + $0x40] sm:$0xff]
        %v414 = vld [vmem:[%s402 + $0x48] sm:$0xff]
        %v415 = vld [vmem:[%s402 + $0x50] sm:$0xff]
        %v416 = vld [vmem:[%s402 + $0x58] sm:$0xff]
        %v417 = vld [vmem:[%s402 + $0x60] sm:$0xff]
        %v418 = vld [vmem:[%s402 + $0x68] sm:$0xff]
        %v419 = vld [vmem:[%s402 + $0x70] sm:$0xff]
        %v420 = vld [vmem:[%s402 + $0x78] sm:$0xff]
        %v421 = vpack.c.bf16 %v406, %v405
        %v422 = vpack.c.bf16 %v408, %v407
        %v423 = vpack.c.bf16 %v410, %v409
        %v424 = vpack.c.bf16 %v412, %v411
        %v425 = vpack.c.bf16 %v414, %v413
        %v426 = vpack.c.bf16 %v416, %v415
        %v427 = vpack.c.bf16 %v418, %v417
        %v428 = vpack.c.bf16 %v420, %v419
        %v429 = vld [vmem:[%s1] sm:$0xff]
        %v430 = vld [vmem:[%s1 + $0x8] sm:$0xff]
        %v431 = vld [vmem:[%s1 + $0x10] sm:$0xff]
        %v432 = vld [vmem:[%s1 + $0x18] sm:$0xff]
        %v433 = vld [vmem:[%s2] sm:$0x3]
        %v435 = vlaneseq
        %v436 = vshrl.u32 %v435, 7
        %v437 = vsub.s32 0, %v436
        %v438 = vrot.slane %v433, %v437
        %v439 = vlaneseq
        %v440 = vshrl.u32 %v439, 7
        %v441 = vsub.s32 1, %v440
        %v442 = vrot.slane %v433, %v441
        %v449 = vunpack.c.l.b16 %v429
        %v450 = vunpack.c.h.b16 %v429
        %v451 = vunpack.c.l.b16 %v430
        %v452 = vunpack.c.h.b16 %v430
        %v453 = vunpack.c.l.b16 %v431
        %v454 = vunpack.c.h.b16 %v431
        %v455 = vunpack.c.l.b16 %v432
        %v456 = vunpack.c.h.b16 %v432
        %v457 = vpack.c.b16 %v451, %v449
        %v458 = vpack.c.b16 %v452, %v450
        %v459 = vpack.c.b16 %v455, %v453
        %v460 = vpack.c.b16 %v456, %v454
        %vm465 = vcmask 261120
        %v467 = vsel %vm465, %v421, 0
        %v470 = vsel %vm465, %v422, 0
        %v473 = vsel %vm465, %v423, 0
        %v476 = vsel %vm465, %v424, 0
        %v479 = vsel %vm465, %v425, 0
        %v482 = vsel %vm465, %v426, 0
        %v485 = vsel %vm465, %v427, 0
        %v488 = vsel %vm465, %v428, 0
        %490 = vmatprep.subr.bf16.mxu0 0
        %491 = vmatpush1.bf16.msra.mxu0 0
        %492 = vmatprep.subr.bf16.mxu0 0
        %493 = vmatpush1.bf16.msra.mxu0 0
        %494 = vmatprep.subr.bf16.mxu0 0
        %495 = vmatpush1.bf16.msra.mxu0 0
        %496 = vmatprep.subr.bf16.mxu0 0
        %497 = vmatpush1.bf16.msra.mxu0 0
        %498 = vmatprep.subr.bf16.mxu0 0
        %499 = vmatpush1.bf16.msra.mxu0 0
        %500 = vmatprep.subr.bf16.mxu0 0
        %501 = vmatpush1.bf16.msra.mxu0 0
        %502 = vmatprep.subr.bf16.mxu0 %v460
        %503 = vmatpush1.bf16.msra.mxu0 %v459
        %504 = vmatprep.subr.bf16.mxu0 %v458
        %505 = vmatpush1.bf16.msra.mxu0 %v457
        %506 = vmatprep.subr.bf16.mxu0 0
        %507 = vmatpush2.bf16.msra.mxu0 0
        %508 = vmatprep.subr.bf16.mxu0 0
        %509 = vmatpush2.bf16.msra.mxu0 0
        %510 = vmatprep.subr.bf16.mxu0 0
        %511 = vmatpush2.bf16.msra.mxu0 0
        %512 = vmatprep.subr.bf16.mxu0 0
        %513 = vmatpush2.bf16.msra.mxu0 0
        %514 = vmatprep.subr.bf16.mxu0 0
        %515 = vmatpush2.bf16.msra.mxu0 0
        %516 = vmatprep.subr.bf16.mxu0 0
        %517 = vmatpush2.bf16.msra.mxu0 0
        %518 = vmatprep.subr.bf16.mxu0 0
        %519 = vmatpush2.bf16.msra.mxu0 0
        %520 = vmatprep.subr.bf16.mxu0 0
        %521 = vmatpush2.bf16.msra.mxu0 0
        %522 = vmatprep.mubr.bf16.mxu0 0
        %523 = vmatmul.mubr.bf16.gmra.mxu0 %v467
        %v524 = vpop.f32.mrf.mxu0
        %v525 = vadd.f32 %v438, %v524
        %v526 = vpop.f32.mrf.mxu0
        %v527 = vadd.f32 %v442, %v526
        %v528 = vpop.f32.mrf.mxu0
        %v529 = vadd.f32 %v438, %v528
        %v530 = vpop.f32.mrf.mxu0
        %v531 = vadd.f32 %v442, %v530
        %532 = vmatprep.mubr.bf16.mxu0 0
        %533 = vmatmul.mubr.bf16.gmra.mxu0 %v470
        %v534 = vpop.f32.mrf.mxu0
        %v535 = vadd.f32 %v438, %v534
        %v536 = vpop.f32.mrf.mxu0
        %v537 = vadd.f32 %v442, %v536
        %v538 = vpop.f32.mrf.mxu0
        %v539 = vadd.f32 %v438, %v538
        %v540 = vpop.f32.mrf.mxu0
        %v541 = vadd.f32 %v442, %v540
        %542 = vmatprep.mubr.bf16.mxu0 0
        %543 = vmatmul.mubr.bf16.gmra.mxu0 %v473
        %v544 = vpop.f32.mrf.mxu0
        %v545 = vadd.f32 %v438, %v544
        %v546 = vpop.f32.mrf.mxu0
        %v547 = vadd.f32 %v442, %v546
        %v548 = vpop.f32.mrf.mxu0
        %v549 = vadd.f32 %v438, %v548
        %v550 = vpop.f32.mrf.mxu0
        %v551 = vadd.f32 %v442, %v550
        %552 = vmatprep.mubr.bf16.mxu0 0
        %553 = vmatmul.mubr.bf16.gmra.mxu0 %v476
        %v554 = vpop.f32.mrf.mxu0
        %v555 = vadd.f32 %v438, %v554
        %v556 = vpop.f32.mrf.mxu0
        %v557 = vadd.f32 %v442, %v556
        %v558 = vpop.f32.mrf.mxu0
        %v559 = vadd.f32 %v438, %v558
        %v560 = vpop.f32.mrf.mxu0
        %v561 = vadd.f32 %v442, %v560
        %562 = vmatprep.mubr.bf16.mxu0 0
        %563 = vmatmul.mubr.bf16.gmra.mxu0 %v479
        %v564 = vpop.f32.mrf.mxu0
        %v565 = vadd.f32 %v438, %v564
        %v566 = vpop.f32.mrf.mxu0
        %v567 = vadd.f32 %v442, %v566
        %v568 = vpop.f32.mrf.mxu0
        %v569 = vadd.f32 %v438, %v568
        %v570 = vpop.f32.mrf.mxu0
        %v571 = vadd.f32 %v442, %v570
        %572 = vmatprep.mubr.bf16.mxu0 0
        %573 = vmatmul.mubr.bf16.gmra.mxu0 %v482
        %v574 = vpop.f32.mrf.mxu0
        %v575 = vadd.f32 %v438, %v574
        %v576 = vpop.f32.mrf.mxu0
        %v577 = vadd.f32 %v442, %v576
        %v578 = vpop.f32.mrf.mxu0
        %v579 = vadd.f32 %v438, %v578
        %v580 = vpop.f32.mrf.mxu0
        %v581 = vadd.f32 %v442, %v580
        %582 = vmatprep.mubr.bf16.mxu0 0
        %583 = vmatmul.mubr.bf16.gmra.mxu0 %v485
        %v584 = vpop.f32.mrf.mxu0
        %v585 = vadd.f32 %v438, %v584
        %v586 = vpop.f32.mrf.mxu0
        %v587 = vadd.f32 %v442, %v586
        %v588 = vpop.f32.mrf.mxu0
        %v589 = vadd.f32 %v438, %v588
        %v590 = vpop.f32.mrf.mxu0
        %v591 = vadd.f32 %v442, %v590
        %592 = vmatprep.mubr.bf16.mxu0 0
        %593 = vmatmul.mubr.bf16.gmra.mxu0 %v488
        %v594 = vpop.f32.mrf.mxu0
        %v595 = vadd.f32 %v438, %v594
        %v596 = vpop.f32.mrf.mxu0
        %v597 = vadd.f32 %v442, %v596
        %v598 = vpop.f32.mrf.mxu0
        %v599 = vadd.f32 %v438, %v598
        %v600 = vpop.f32.mrf.mxu0
        %v601 = vadd.f32 %v442, %v600
        %602 = vdwg.mxu0
        %v603 = vmul.f32 %v525, 0.01
        %v604 = vmul.f32 %v527, 0.01
        %v605 = vmul.f32 %v529, 0.01
        %v606 = vmul.f32 %v531, 0.01
        %v607 = vmul.f32 %v535, 0.01
        %v608 = vmul.f32 %v537, 0.01
        %v609 = vmul.f32 %v539, 0.01
        %v610 = vmul.f32 %v541, 0.01
        %v611 = vmul.f32 %v545, 0.01
        %v612 = vmul.f32 %v547, 0.01
        %v613 = vmul.f32 %v549, 0.01
        %v614 = vmul.f32 %v551, 0.01
        %v615 = vmul.f32 %v555, 0.01
        %v616 = vmul.f32 %v557, 0.01
        %v617 = vmul.f32 %v559, 0.01
        %v618 = vmul.f32 %v561, 0.01
        %v619 = vmul.f32 %v565, 0.01
        %v620 = vmul.f32 %v567, 0.01
        %v621 = vmul.f32 %v569, 0.01
        %v622 = vmul.f32 %v571, 0.01
        %v623 = vmul.f32 %v575, 0.01
        %v624 = vmul.f32 %v577, 0.01
        %v625 = vmul.f32 %v579, 0.01
        %v626 = vmul.f32 %v581, 0.01
        %v627 = vmul.f32 %v585, 0.01
        %v628 = vmul.f32 %v587, 0.01
        %v629 = vmul.f32 %v589, 0.01
        %v630 = vmul.f32 %v591, 0.01
        %v631 = vmul.f32 %v595, 0.01
        %v632 = vmul.f32 %v597, 0.01
        %v633 = vmul.f32 %v599, 0.01
        %v634 = vmul.f32 %v601, 0.01
        %v635 = vmax.f32 %v525, %v603
        %v636 = vmax.f32 %v527, %v604
        %v637 = vmax.f32 %v529, %v605
        %v638 = vmax.f32 %v531, %v606
        %v639 = vmax.f32 %v535, %v607
        %v640 = vmax.f32 %v537, %v608
        %v641 = vmax.f32 %v539, %v609
        %v642 = vmax.f32 %v541, %v610
        %v643 = vmax.f32 %v545, %v611
        %v644 = vmax.f32 %v547, %v612
        %v645 = vmax.f32 %v549, %v613
        %v646 = vmax.f32 %v551, %v614
        %v647 = vmax.f32 %v555, %v615
        %v648 = vmax.f32 %v557, %v616
        %v649 = vmax.f32 %v559, %v617
        %v650 = vmax.f32 %v561, %v618
        %v651 = vmax.f32 %v565, %v619
        %v652 = vmax.f32 %v567, %v620
        %v653 = vmax.f32 %v569, %v621
        %v654 = vmax.f32 %v571, %v622
        %v655 = vmax.f32 %v575, %v623
        %v656 = vmax.f32 %v577, %v624
        %v657 = vmax.f32 %v579, %v625
        %v658 = vmax.f32 %v581, %v626
        %v659 = vmax.f32 %v585, %v627
        %v660 = vmax.f32 %v587, %v628
        %v661 = vmax.f32 %v589, %v629
        %v662 = vmax.f32 %v591, %v630
        %v663 = vmax.f32 %v595, %v631
        %v664 = vmax.f32 %v597, %v632
        %v665 = vmax.f32 %v599, %v633
        %v666 = vmax.f32 %v601, %v634
        %v667 = vpack.c.bf16 %v637, %v635
        %v668 = vpack.c.bf16 %v638, %v636
        %v669 = vpack.c.bf16 %v641, %v639
        %v670 = vpack.c.bf16 %v642, %v640
        %v671 = vpack.c.bf16 %v645, %v643
        %v672 = vpack.c.bf16 %v646, %v644
        %v673 = vpack.c.bf16 %v649, %v647
        %v674 = vpack.c.bf16 %v650, %v648
        %v675 = vpack.c.bf16 %v653, %v651
        %v676 = vpack.c.bf16 %v654, %v652
        %v677 = vpack.c.bf16 %v657, %v655
        %v678 = vpack.c.bf16 %v658, %v656
        %v679 = vpack.c.bf16 %v661, %v659
        %v680 = vpack.c.bf16 %v662, %v660
        %v681 = vpack.c.bf16 %v665, %v663
        %v682 = vpack.c.bf16 %v666, %v664
        %v683 = vld [vmem:[%s3] sm:$0xff]
        %v684 = vld [vmem:[%s3 + $0x8] sm:$0xff]
        %v685 = vld [vmem:[%s3 + $0x10] sm:$0xff]
        %v686 = vld [vmem:[%s3 + $0x18] sm:$0xff]
        %v687 = vld [vmem:[%s3 + $0x20] sm:$0xff]
        %v688 = vld [vmem:[%s3 + $0x28] sm:$0xff]
        %v689 = vld [vmem:[%s3 + $0x30] sm:$0xff]
        %v690 = vld [vmem:[%s3 + $0x38] sm:$0xff]
        %v691 = vld [vmem:[%s3 + $0x40] sm:$0xff]
        %v692 = vld [vmem:[%s3 + $0x48] sm:$0xff]
        %v693 = vld [vmem:[%s3 + $0x50] sm:$0xff]
        %v694 = vld [vmem:[%s3 + $0x58] sm:$0xff]
        %v695 = vld [vmem:[%s3 + $0x60] sm:$0xff]
        %v696 = vld [vmem:[%s3 + $0x68] sm:$0xff]
        %v697 = vld [vmem:[%s3 + $0x70] sm:$0xff]
        %v698 = vld [vmem:[%s3 + $0x78] sm:$0xff]
        %v699 = vld [vmem:[%s3 + $0x80] sm:$0xff]
        %v700 = vld [vmem:[%s3 + $0x88] sm:$0xff]
        %v701 = vld [vmem:[%s3 + $0x90] sm:$0xff]
        %v702 = vld [vmem:[%s3 + $0x98] sm:$0xff]
        %v703 = vld [vmem:[%s3 + $0xa0] sm:$0xff]
        %v704 = vld [vmem:[%s3 + $0xa8] sm:$0xff]
        %v705 = vld [vmem:[%s3 + $0xb0] sm:$0xff]
        %v706 = vld [vmem:[%s3 + $0xb8] sm:$0xff]
        %v707 = vld [vmem:[%s3 + $0xc0] sm:$0xff]
        %v708 = vld [vmem:[%s3 + $0xc8] sm:$0xff]
        %v709 = vld [vmem:[%s3 + $0xd0] sm:$0xff]
        %v710 = vld [vmem:[%s3 + $0xd8] sm:$0xff]
        %v711 = vld [vmem:[%s3 + $0xe0] sm:$0xff]
        %v712 = vld [vmem:[%s3 + $0xe8] sm:$0xff]
        %v713 = vld [vmem:[%s3 + $0xf0] sm:$0xff]
        %v714 = vld [vmem:[%s3 + $0xf8] sm:$0xff]
        %v715 = vld [vmem:[%s4] sm:$0x3]
        %v717 = vlaneseq
        %v718 = vshrl.u32 %v717, 7
        %v719 = vsub.s32 0, %v718
        %v720 = vrot.slane %v715, %v719
        %v721 = vlaneseq
        %v722 = vshrl.u32 %v721, 7
        %v723 = vsub.s32 1, %v722
        %v724 = vrot.slane %v715, %v723
        %v759 = vunpack.c.l.b16 %v683
        %v760 = vunpack.c.h.b16 %v683
        %v761 = vunpack.c.l.b16 %v684
        %v762 = vunpack.c.h.b16 %v684
        %v763 = vunpack.c.l.b16 %v685
        %v764 = vunpack.c.h.b16 %v685
        %v765 = vunpack.c.l.b16 %v686
        %v766 = vunpack.c.h.b16 %v686
        %v767 = vunpack.c.l.b16 %v687
        %v768 = vunpack.c.h.b16 %v687
        %v769 = vunpack.c.l.b16 %v688
        %v770 = vunpack.c.h.b16 %v688
        %v771 = vunpack.c.l.b16 %v689
        %v772 = vunpack.c.h.b16 %v689
        %v773 = vunpack.c.l.b16 %v690
        %v774 = vunpack.c.h.b16 %v690
        %v775 = vunpack.c.l.b16 %v691
        %v776 = vunpack.c.h.b16 %v691
        %v777 = vunpack.c.l.b16 %v692
        %v778 = vunpack.c.h.b16 %v692
        %v779 = vunpack.c.l.b16 %v693
        %v780 = vunpack.c.h.b16 %v693
        %v781 = vunpack.c.l.b16 %v694
        %v782 = vunpack.c.h.b16 %v694
        %v783 = vunpack.c.l.b16 %v695
        %v784 = vunpack.c.h.b16 %v695
        %v785 = vunpack.c.l.b16 %v696
        %v786 = vunpack.c.h.b16 %v696
        %v787 = vunpack.c.l.b16 %v697
        %v788 = vunpack.c.h.b16 %v697
        %v789 = vunpack.c.l.b16 %v698
        %v790 = vunpack.c.h.b16 %v698
        %v791 = vunpack.c.l.b16 %v699
        %v792 = vunpack.c.h.b16 %v699
        %v793 = vunpack.c.l.b16 %v700
        %v794 = vunpack.c.h.b16 %v700
        %v795 = vunpack.c.l.b16 %v701
        %v796 = vunpack.c.h.b16 %v701
        %v797 = vunpack.c.l.b16 %v702
        %v798 = vunpack.c.h.b16 %v702
        %v799 = vunpack.c.l.b16 %v703
        %v800 = vunpack.c.h.b16 %v703
        %v801 = vunpack.c.l.b16 %v704
        %v802 = vunpack.c.h.b16 %v704
        %v803 = vunpack.c.l.b16 %v705
        %v804 = vunpack.c.h.b16 %v705
        %v805 = vunpack.c.l.b16 %v706
        %v806 = vunpack.c.h.b16 %v706
        %v807 = vunpack.c.l.b16 %v707
        %v808 = vunpack.c.h.b16 %v707
        %v809 = vunpack.c.l.b16 %v708
        %v810 = vunpack.c.h.b16 %v708
        %v811 = vunpack.c.l.b16 %v709
        %v812 = vunpack.c.h.b16 %v709
        %v813 = vunpack.c.l.b16 %v710
        %v814 = vunpack.c.h.b16 %v710
        %v815 = vunpack.c.l.b16 %v711
        %v816 = vunpack.c.h.b16 %v711
        %v817 = vunpack.c.l.b16 %v712
        %v818 = vunpack.c.h.b16 %v712
        %v819 = vunpack.c.l.b16 %v713
        %v820 = vunpack.c.h.b16 %v713
        %v821 = vunpack.c.l.b16 %v714
        %v822 = vunpack.c.h.b16 %v714
        %v823 = vpack.c.b16 %v761, %v759
        %v824 = vpack.c.b16 %v762, %v760
        %v825 = vpack.c.b16 %v765, %v763
        %v826 = vpack.c.b16 %v766, %v764
        %v827 = vpack.c.b16 %v769, %v767
        %v828 = vpack.c.b16 %v770, %v768
        %v829 = vpack.c.b16 %v773, %v771
        %v830 = vpack.c.b16 %v774, %v772
        %v831 = vpack.c.b16 %v777, %v775
        %v832 = vpack.c.b16 %v778, %v776
        %v833 = vpack.c.b16 %v781, %v779
        %v834 = vpack.c.b16 %v782, %v780
        %v835 = vpack.c.b16 %v785, %v783
        %v836 = vpack.c.b16 %v786, %v784
        %v837 = vpack.c.b16 %v789, %v787
        %v838 = vpack.c.b16 %v790, %v788
        %v839 = vpack.c.b16 %v793, %v791
        %v840 = vpack.c.b16 %v794, %v792
        %v841 = vpack.c.b16 %v797, %v795
        %v842 = vpack.c.b16 %v798, %v796
        %v843 = vpack.c.b16 %v801, %v799
        %v844 = vpack.c.b16 %v802, %v800
        %v845 = vpack.c.b16 %v805, %v803
        %v846 = vpack.c.b16 %v806, %v804
        %v847 = vpack.c.b16 %v809, %v807
        %v848 = vpack.c.b16 %v810, %v808
        %v849 = vpack.c.b16 %v813, %v811
        %v850 = vpack.c.b16 %v814, %v812
        %v851 = vpack.c.b16 %v817, %v815
        %v852 = vpack.c.b16 %v818, %v816
        %v853 = vpack.c.b16 %v821, %v819
        %v854 = vpack.c.b16 %v822, %v820
        %887 = vmatprep.subr.bf16.mxu0 %v838
        %888 = vmatpush1.bf16.msra.mxu0 %v837
        %889 = vmatprep.subr.bf16.mxu0 %v836
        %890 = vmatpush1.bf16.msra.mxu0 %v835
        %891 = vmatprep.subr.bf16.mxu0 %v834
        %892 = vmatpush1.bf16.msra.mxu0 %v833
        %893 = vmatprep.subr.bf16.mxu0 %v832
        %894 = vmatpush1.bf16.msra.mxu0 %v831
        %895 = vmatprep.subr.bf16.mxu0 %v830
        %896 = vmatpush1.bf16.msra.mxu0 %v829
        %897 = vmatprep.subr.bf16.mxu0 %v828
        %898 = vmatpush1.bf16.msra.mxu0 %v827
        %899 = vmatprep.subr.bf16.mxu0 %v826
        %900 = vmatpush1.bf16.msra.mxu0 %v825
        %901 = vmatprep.subr.bf16.mxu0 %v824
        %902 = vmatpush1.bf16.msra.mxu0 %v823
        %903 = vmatprep.subr.bf16.mxu0 %v854
        %904 = vmatpush2.bf16.msra.mxu0 %v853
        %905 = vmatprep.subr.bf16.mxu0 %v852
        %906 = vmatpush2.bf16.msra.mxu0 %v851
        %907 = vmatprep.subr.bf16.mxu0 %v850
        %908 = vmatpush2.bf16.msra.mxu0 %v849
        %909 = vmatprep.subr.bf16.mxu0 %v848
        %910 = vmatpush2.bf16.msra.mxu0 %v847
        %911 = vmatprep.subr.bf16.mxu0 %v846
        %912 = vmatpush2.bf16.msra.mxu0 %v845
        %913 = vmatprep.subr.bf16.mxu0 %v844
        %914 = vmatpush2.bf16.msra.mxu0 %v843
        %915 = vmatprep.subr.bf16.mxu0 %v842
        %916 = vmatpush2.bf16.msra.mxu0 %v841
        %917 = vmatprep.subr.bf16.mxu0 %v840
        %918 = vmatpush2.bf16.msra.mxu0 %v839
        %919 = vmatprep.mubr.bf16.mxu0 %v668
        %920 = vmatmul.mubr.bf16.gmra.mxu0 %v667
        %v921 = vpop.f32.mrf.mxu0
        %v922 = vadd.f32 %v720, %v921
        %v923 = vpop.f32.mrf.mxu0
        %v924 = vadd.f32 %v724, %v923
        %v925 = vpop.f32.mrf.mxu0
        %v926 = vadd.f32 %v720, %v925
        %v927 = vpop.f32.mrf.mxu0
        %v928 = vadd.f32 %v724, %v927
        %929 = vmatprep.mubr.bf16.mxu0 %v670
        %930 = vmatmul.mubr.bf16.gmra.mxu0 %v669
        %v931 = vpop.f32.mrf.mxu0
        %v932 = vadd.f32 %v720, %v931
        %v933 = vpop.f32.mrf.mxu0
        %v934 = vadd.f32 %v724, %v933
        %v935 = vpop.f32.mrf.mxu0
        %v936 = vadd.f32 %v720, %v935
        %v937 = vpop.f32.mrf.mxu0
        %v938 = vadd.f32 %v724, %v937
        %939 = vmatprep.mubr.bf16.mxu0 %v672
        %940 = vmatmul.mubr.bf16.gmra.mxu0 %v671
        %v941 = vpop.f32.mrf.mxu0
        %v942 = vadd.f32 %v720, %v941
        %v943 = vpop.f32.mrf.mxu0
        %v944 = vadd.f32 %v724, %v943
        %v945 = vpop.f32.mrf.mxu0
        %v946 = vadd.f32 %v720, %v945
        %v947 = vpop.f32.mrf.mxu0
        %v948 = vadd.f32 %v724, %v947
        %949 = vmatprep.mubr.bf16.mxu0 %v674
        %950 = vmatmul.mubr.bf16.gmra.mxu0 %v673
        %v951 = vpop.f32.mrf.mxu0
        %v952 = vadd.f32 %v720, %v951
        %v953 = vpop.f32.mrf.mxu0
        %v954 = vadd.f32 %v724, %v953
        %v955 = vpop.f32.mrf.mxu0
        %v956 = vadd.f32 %v720, %v955
        %v957 = vpop.f32.mrf.mxu0
        %v958 = vadd.f32 %v724, %v957
        %959 = vmatprep.mubr.bf16.mxu0 %v676
        %960 = vmatmul.mubr.bf16.gmra.mxu0 %v675
        %v961 = vpop.f32.mrf.mxu0
        %v962 = vadd.f32 %v720, %v961
        %v963 = vpop.f32.mrf.mxu0
        %v964 = vadd.f32 %v724, %v963
        %v965 = vpop.f32.mrf.mxu0
        %v966 = vadd.f32 %v720, %v965
        %v967 = vpop.f32.mrf.mxu0
        %v968 = vadd.f32 %v724, %v967
        %969 = vmatprep.mubr.bf16.mxu0 %v678
        %970 = vmatmul.mubr.bf16.gmra.mxu0 %v677
        %v971 = vpop.f32.mrf.mxu0
        %v972 = vadd.f32 %v720, %v971
        %v973 = vpop.f32.mrf.mxu0
        %v974 = vadd.f32 %v724, %v973
        %v975 = vpop.f32.mrf.mxu0
        %v976 = vadd.f32 %v720, %v975
        %v977 = vpop.f32.mrf.mxu0
        %v978 = vadd.f32 %v724, %v977
        %979 = vmatprep.mubr.bf16.mxu0 %v680
        %980 = vmatmul.mubr.bf16.gmra.mxu0 %v679
        %v981 = vpop.f32.mrf.mxu0
        %v982 = vadd.f32 %v720, %v981
        %v983 = vpop.f32.mrf.mxu0
        %v984 = vadd.f32 %v724, %v983
        %v985 = vpop.f32.mrf.mxu0
        %v986 = vadd.f32 %v720, %v985
        %v987 = vpop.f32.mrf.mxu0
        %v988 = vadd.f32 %v724, %v987
        %989 = vmatprep.mubr.bf16.mxu0 %v682
        %990 = vmatmul.mubr.bf16.gmra.mxu0 %v681
        %v991 = vpop.f32.mrf.mxu0
        %v992 = vadd.f32 %v720, %v991
        %v993 = vpop.f32.mrf.mxu0
        %v994 = vadd.f32 %v724, %v993
        %v995 = vpop.f32.mrf.mxu0
        %v996 = vadd.f32 %v720, %v995
        %v997 = vpop.f32.mrf.mxu0
        %v998 = vadd.f32 %v724, %v997
        %999 = vdwg.mxu0
        %v1000 = vmul.f32 %v922, 0.01
        %v1001 = vmul.f32 %v924, 0.01
        %v1002 = vmul.f32 %v926, 0.01
        %v1003 = vmul.f32 %v928, 0.01
        %v1004 = vmul.f32 %v932, 0.01
        %v1005 = vmul.f32 %v934, 0.01
        %v1006 = vmul.f32 %v936, 0.01
        %v1007 = vmul.f32 %v938, 0.01
        %v1008 = vmul.f32 %v942, 0.01
        %v1009 = vmul.f32 %v944, 0.01
        %v1010 = vmul.f32 %v946, 0.01
        %v1011 = vmul.f32 %v948, 0.01
        %v1012 = vmul.f32 %v952, 0.01
        %v1013 = vmul.f32 %v954, 0.01
        %v1014 = vmul.f32 %v956, 0.01
        %v1015 = vmul.f32 %v958, 0.01
        %v1016 = vmul.f32 %v962, 0.01
        %v1017 = vmul.f32 %v964, 0.01
        %v1018 = vmul.f32 %v966, 0.01
        %v1019 = vmul.f32 %v968, 0.01
        %v1020 = vmul.f32 %v972, 0.01
        %v1021 = vmul.f32 %v974, 0.01
        %v1022 = vmul.f32 %v976, 0.01
        %v1023 = vmul.f32 %v978, 0.01
        %v1024 = vmul.f32 %v982, 0.01
        %v1025 = vmul.f32 %v984, 0.01
        %v1026 = vmul.f32 %v986, 0.01
        %v1027 = vmul.f32 %v988, 0.01
        %v1028 = vmul.f32 %v992, 0.01
        %v1029 = vmul.f32 %v994, 0.01
        %v1030 = vmul.f32 %v996, 0.01
        %v1031 = vmul.f32 %v998, 0.01
        %v1032 = vmax.f32 %v922, %v1000
        %v1033 = vmax.f32 %v924, %v1001
        %v1034 = vmax.f32 %v926, %v1002
        %v1035 = vmax.f32 %v928, %v1003
        %v1036 = vmax.f32 %v932, %v1004
        %v1037 = vmax.f32 %v934, %v1005
        %v1038 = vmax.f32 %v936, %v1006
        %v1039 = vmax.f32 %v938, %v1007
        %v1040 = vmax.f32 %v942, %v1008
        %v1041 = vmax.f32 %v944, %v1009
        %v1042 = vmax.f32 %v946, %v1010
        %v1043 = vmax.f32 %v948, %v1011
        %v1044 = vmax.f32 %v952, %v1012
        %v1045 = vmax.f32 %v954, %v1013
        %v1046 = vmax.f32 %v956, %v1014
        %v1047 = vmax.f32 %v958, %v1015
        %v1048 = vmax.f32 %v962, %v1016
        %v1049 = vmax.f32 %v964, %v1017
        %v1050 = vmax.f32 %v966, %v1018
        %v1051 = vmax.f32 %v968, %v1019
        %v1052 = vmax.f32 %v972, %v1020
        %v1053 = vmax.f32 %v974, %v1021
        %v1054 = vmax.f32 %v976, %v1022
        %v1055 = vmax.f32 %v978, %v1023
        %v1056 = vmax.f32 %v982, %v1024
        %v1057 = vmax.f32 %v984, %v1025
        %v1058 = vmax.f32 %v986, %v1026
        %v1059 = vmax.f32 %v988, %v1027
        %v1060 = vmax.f32 %v992, %v1028
        %v1061 = vmax.f32 %v994, %v1029
        %v1062 = vmax.f32 %v996, %v1030
        %v1063 = vmax.f32 %v998, %v1031
        %v1064 = vpack.c.bf16 %v1034, %v1032
        %v1065 = vpack.c.bf16 %v1035, %v1033
        %v1066 = vpack.c.bf16 %v1038, %v1036
        %v1067 = vpack.c.bf16 %v1039, %v1037
        %v1068 = vpack.c.bf16 %v1042, %v1040
        %v1069 = vpack.c.bf16 %v1043, %v1041
        %v1070 = vpack.c.bf16 %v1046, %v1044
        %v1071 = vpack.c.bf16 %v1047, %v1045
        %v1072 = vpack.c.bf16 %v1050, %v1048
        %v1073 = vpack.c.bf16 %v1051, %v1049
        %v1074 = vpack.c.bf16 %v1054, %v1052
        %v1075 = vpack.c.bf16 %v1055, %v1053
        %v1076 = vpack.c.bf16 %v1058, %v1056
        %v1077 = vpack.c.bf16 %v1059, %v1057
        %v1078 = vpack.c.bf16 %v1062, %v1060
        %v1079 = vpack.c.bf16 %v1063, %v1061
        %v1080 = vld [vmem:[%s5] sm:$0xff]
        %v1081 = vld [vmem:[%s5 + $0x8] sm:$0xff]
        %v1082 = vld [vmem:[%s5 + $0x10] sm:$0xff]
        %v1083 = vld [vmem:[%s5 + $0x18] sm:$0xff]
        %v1084 = vld [vmem:[%s5 + $0x20] sm:$0xff]
        %v1085 = vld [vmem:[%s5 + $0x28] sm:$0xff]
        %v1086 = vld [vmem:[%s5 + $0x30] sm:$0xff]
        %v1087 = vld [vmem:[%s5 + $0x38] sm:$0xff]
        %v1088 = vld [vmem:[%s5 + $0x40] sm:$0xff]
        %v1089 = vld [vmem:[%s5 + $0x48] sm:$0xff]
        %v1090 = vld [vmem:[%s5 + $0x50] sm:$0xff]
        %v1091 = vld [vmem:[%s5 + $0x58] sm:$0xff]
        %v1092 = vld [vmem:[%s5 + $0x60] sm:$0xff]
        %v1093 = vld [vmem:[%s5 + $0x68] sm:$0xff]
        %v1094 = vld [vmem:[%s5 + $0x70] sm:$0xff]
        %v1095 = vld [vmem:[%s5 + $0x78] sm:$0xff]
        %v1096 = vld [vmem:[%s5 + $0x80] sm:$0xff]
        %v1097 = vld [vmem:[%s5 + $0x88] sm:$0xff]
        %v1098 = vld [vmem:[%s5 + $0x90] sm:$0xff]
        %v1099 = vld [vmem:[%s5 + $0x98] sm:$0xff]
        %v1100 = vld [vmem:[%s5 + $0xa0] sm:$0xff]
        %v1101 = vld [vmem:[%s5 + $0xa8] sm:$0xff]
        %v1102 = vld [vmem:[%s5 + $0xb0] sm:$0xff]
        %v1103 = vld [vmem:[%s5 + $0xb8] sm:$0xff]
        %v1104 = vld [vmem:[%s5 + $0xc0] sm:$0xff]
        %v1105 = vld [vmem:[%s5 + $0xc8] sm:$0xff]
        %v1106 = vld [vmem:[%s5 + $0xd0] sm:$0xff]
        %v1107 = vld [vmem:[%s5 + $0xd8] sm:$0xff]
        %v1108 = vld [vmem:[%s5 + $0xe0] sm:$0xff]
        %v1109 = vld [vmem:[%s5 + $0xe8] sm:$0xff]
        %v1110 = vld [vmem:[%s5 + $0xf0] sm:$0xff]
        %v1111 = vld [vmem:[%s5 + $0xf8] sm:$0xff]
        %v1112 = vld [vmem:[%s6] sm:$0x3]
        %v1114 = vlaneseq
        %v1115 = vshrl.u32 %v1114, 7
        %v1116 = vsub.s32 0, %v1115
        %v1117 = vrot.slane %v1112, %v1116
        %v1118 = vlaneseq
        %v1119 = vshrl.u32 %v1118, 7
        %v1120 = vsub.s32 1, %v1119
        %v1121 = vrot.slane %v1112, %v1120
        %v1156 = vunpack.c.l.b16 %v1080
        %v1157 = vunpack.c.h.b16 %v1080
        %v1158 = vunpack.c.l.b16 %v1081
        %v1159 = vunpack.c.h.b16 %v1081
        %v1160 = vunpack.c.l.b16 %v1082
        %v1161 = vunpack.c.h.b16 %v1082
        %v1162 = vunpack.c.l.b16 %v1083
        %v1163 = vunpack.c.h.b16 %v1083
        %v1164 = vunpack.c.l.b16 %v1084
        %v1165 = vunpack.c.h.b16 %v1084
        %v1166 = vunpack.c.l.b16 %v1085
        %v1167 = vunpack.c.h.b16 %v1085
        %v1168 = vunpack.c.l.b16 %v1086
        %v1169 = vunpack.c.h.b16 %v1086
        %v1170 = vunpack.c.l.b16 %v1087
        %v1171 = vunpack.c.h.b16 %v1087
        %v1172 = vunpack.c.l.b16 %v1088
        %v1173 = vunpack.c.h.b16 %v1088
        %v1174 = vunpack.c.l.b16 %v1089
        %v1175 = vunpack.c.h.b16 %v1089
        %v1176 = vunpack.c.l.b16 %v1090
        %v1177 = vunpack.c.h.b16 %v1090
        %v1178 = vunpack.c.l.b16 %v1091
        %v1179 = vunpack.c.h.b16 %v1091
        %v1180 = vunpack.c.l.b16 %v1092
        %v1181 = vunpack.c.h.b16 %v1092
        %v1182 = vunpack.c.l.b16 %v1093
        %v1183 = vunpack.c.h.b16 %v1093
        %v1184 = vunpack.c.l.b16 %v1094
        %v1185 = vunpack.c.h.b16 %v1094
        %v1186 = vunpack.c.l.b16 %v1095
        %v1187 = vunpack.c.h.b16 %v1095
        %v1188 = vunpack.c.l.b16 %v1096
        %v1189 = vunpack.c.h.b16 %v1096
        %v1190 = vunpack.c.l.b16 %v1097
        %v1191 = vunpack.c.h.b16 %v1097
        %v1192 = vunpack.c.l.b16 %v1098
        %v1193 = vunpack.c.h.b16 %v1098
        %v1194 = vunpack.c.l.b16 %v1099
        %v1195 = vunpack.c.h.b16 %v1099
        %v1196 = vunpack.c.l.b16 %v1100
        %v1197 = vunpack.c.h.b16 %v1100
        %v1198 = vunpack.c.l.b16 %v1101
        %v1199 = vunpack.c.h.b16 %v1101
        %v1200 = vunpack.c.l.b16 %v1102
        %v1201 = vunpack.c.h.b16 %v1102
        %v1202 = vunpack.c.l.b16 %v1103
        %v1203 = vunpack.c.h.b16 %v1103
        %v1204 = vunpack.c.l.b16 %v1104
        %v1205 = vunpack.c.h.b16 %v1104
        %v1206 = vunpack.c.l.b16 %v1105
        %v1207 = vunpack.c.h.b16 %v1105
        %v1208 = vunpack.c.l.b16 %v1106
        %v1209 = vunpack.c.h.b16 %v1106
        %v1210 = vunpack.c.l.b16 %v1107
        %v1211 = vunpack.c.h.b16 %v1107
        %v1212 = vunpack.c.l.b16 %v1108
        %v1213 = vunpack.c.h.b16 %v1108
        %v1214 = vunpack.c.l.b16 %v1109
        %v1215 = vunpack.c.h.b16 %v1109
        %v1216 = vunpack.c.l.b16 %v1110
        %v1217 = vunpack.c.h.b16 %v1110
        %v1218 = vunpack.c.l.b16 %v1111
        %v1219 = vunpack.c.h.b16 %v1111
        %v1220 = vpack.c.b16 %v1158, %v1156
        %v1221 = vpack.c.b16 %v1159, %v1157
        %v1222 = vpack.c.b16 %v1162, %v1160
        %v1223 = vpack.c.b16 %v1163, %v1161
        %v1224 = vpack.c.b16 %v1166, %v1164
        %v1225 = vpack.c.b16 %v1167, %v1165
        %v1226 = vpack.c.b16 %v1170, %v1168
        %v1227 = vpack.c.b16 %v1171, %v1169
        %v1228 = vpack.c.b16 %v1174, %v1172
        %v1229 = vpack.c.b16 %v1175, %v1173
        %v1230 = vpack.c.b16 %v1178, %v1176
        %v1231 = vpack.c.b16 %v1179, %v1177
        %v1232 = vpack.c.b16 %v1182, %v1180
        %v1233 = vpack.c.b16 %v1183, %v1181
        %v1234 = vpack.c.b16 %v1186, %v1184
        %v1235 = vpack.c.b16 %v1187, %v1185
        %v1236 = vpack.c.b16 %v1190, %v1188
        %v1237 = vpack.c.b16 %v1191, %v1189
        %v1238 = vpack.c.b16 %v1194, %v1192
        %v1239 = vpack.c.b16 %v1195, %v1193
        %v1240 = vpack.c.b16 %v1198, %v1196
        %v1241 = vpack.c.b16 %v1199, %v1197
        %v1242 = vpack.c.b16 %v1202, %v1200
        %v1243 = vpack.c.b16 %v1203, %v1201
        %v1244 = vpack.c.b16 %v1206, %v1204
        %v1245 = vpack.c.b16 %v1207, %v1205
        %v1246 = vpack.c.b16 %v1210, %v1208
        %v1247 = vpack.c.b16 %v1211, %v1209
        %v1248 = vpack.c.b16 %v1214, %v1212
        %v1249 = vpack.c.b16 %v1215, %v1213
        %v1250 = vpack.c.b16 %v1218, %v1216
        %v1251 = vpack.c.b16 %v1219, %v1217
        %1284 = vmatprep.subr.bf16.mxu0 %v1235
        %1285 = vmatpush1.bf16.msra.mxu0 %v1234
        %1286 = vmatprep.subr.bf16.mxu0 %v1233
        %1287 = vmatpush1.bf16.msra.mxu0 %v1232
        %1288 = vmatprep.subr.bf16.mxu0 %v1231
        %1289 = vmatpush1.bf16.msra.mxu0 %v1230
        %1290 = vmatprep.subr.bf16.mxu0 %v1229
        %1291 = vmatpush1.bf16.msra.mxu0 %v1228
        %1292 = vmatprep.subr.bf16.mxu0 %v1227
        %1293 = vmatpush1.bf16.msra.mxu0 %v1226
        %1294 = vmatprep.subr.bf16.mxu0 %v1225
        %1295 = vmatpush1.bf16.msra.mxu0 %v1224
        %1296 = vmatprep.subr.bf16.mxu0 %v1223
        %1297 = vmatpush1.bf16.msra.mxu0 %v1222
        %1298 = vmatprep.subr.bf16.mxu0 %v1221
        %1299 = vmatpush1.bf16.msra.mxu0 %v1220
        %1300 = vmatprep.subr.bf16.mxu0 %v1251
        %1301 = vmatpush2.bf16.msra.mxu0 %v1250
        %1302 = vmatprep.subr.bf16.mxu0 %v1249
        %1303 = vmatpush2.bf16.msra.mxu0 %v1248
        %1304 = vmatprep.subr.bf16.mxu0 %v1247
        %1305 = vmatpush2.bf16.msra.mxu0 %v1246
        %1306 = vmatprep.subr.bf16.mxu0 %v1245
        %1307 = vmatpush2.bf16.msra.mxu0 %v1244
        %1308 = vmatprep.subr.bf16.mxu0 %v1243
        %1309 = vmatpush2.bf16.msra.mxu0 %v1242
        %1310 = vmatprep.subr.bf16.mxu0 %v1241
        %1311 = vmatpush2.bf16.msra.mxu0 %v1240
        %1312 = vmatprep.subr.bf16.mxu0 %v1239
        %1313 = vmatpush2.bf16.msra.mxu0 %v1238
        %1314 = vmatprep.subr.bf16.mxu0 %v1237
        %1315 = vmatpush2.bf16.msra.mxu0 %v1236
        %1316 = vmatprep.mubr.bf16.mxu0 %v1065
        %1317 = vmatmul.mubr.bf16.gmra.mxu0 %v1064
        %v1318 = vpop.f32.mrf.mxu0
        %v1319 = vadd.f32 %v1117, %v1318
        %v1320 = vpop.f32.mrf.mxu0
        %v1321 = vadd.f32 %v1121, %v1320
        %v1322 = vpop.f32.mrf.mxu0
        %v1323 = vadd.f32 %v1117, %v1322
        %v1324 = vpop.f32.mrf.mxu0
        %v1325 = vadd.f32 %v1121, %v1324
        %1326 = vmatprep.mubr.bf16.mxu0 %v1067
        %1327 = vmatmul.mubr.bf16.gmra.mxu0 %v1066
        %v1328 = vpop.f32.mrf.mxu0
        %v1329 = vadd.f32 %v1117, %v1328
        %v1330 = vpop.f32.mrf.mxu0
        %v1331 = vadd.f32 %v1121, %v1330
        %v1332 = vpop.f32.mrf.mxu0
        %v1333 = vadd.f32 %v1117, %v1332
        %v1334 = vpop.f32.mrf.mxu0
        %v1335 = vadd.f32 %v1121, %v1334
        %1336 = vmatprep.mubr.bf16.mxu0 %v1069
        %1337 = vmatmul.mubr.bf16.gmra.mxu0 %v1068
        %v1338 = vpop.f32.mrf.mxu0
        %v1339 = vadd.f32 %v1117, %v1338
        %v1340 = vpop.f32.mrf.mxu0
        %v1341 = vadd.f32 %v1121, %v1340
        %v1342 = vpop.f32.mrf.mxu0
        %v1343 = vadd.f32 %v1117, %v1342
        %v1344 = vpop.f32.mrf.mxu0
        %v1345 = vadd.f32 %v1121, %v1344
        %1346 = vmatprep.mubr.bf16.mxu0 %v1071
        %1347 = vmatmul.mubr.bf16.gmra.mxu0 %v1070
        %v1348 = vpop.f32.mrf.mxu0
        %v1349 = vadd.f32 %v1117, %v1348
        %v1350 = vpop.f32.mrf.mxu0
        %v1351 = vadd.f32 %v1121, %v1350
        %v1352 = vpop.f32.mrf.mxu0
        %v1353 = vadd.f32 %v1117, %v1352
        %v1354 = vpop.f32.mrf.mxu0
        %v1355 = vadd.f32 %v1121, %v1354
        %1356 = vmatprep.mubr.bf16.mxu0 %v1073
        %1357 = vmatmul.mubr.bf16.gmra.mxu0 %v1072
        %v1358 = vpop.f32.mrf.mxu0
        %v1359 = vadd.f32 %v1117, %v1358
        %v1360 = vpop.f32.mrf.mxu0
        %v1361 = vadd.f32 %v1121, %v1360
        %v1362 = vpop.f32.mrf.mxu0
        %v1363 = vadd.f32 %v1117, %v1362
        %v1364 = vpop.f32.mrf.mxu0
        %v1365 = vadd.f32 %v1121, %v1364
        %1366 = vmatprep.mubr.bf16.mxu0 %v1075
        %1367 = vmatmul.mubr.bf16.gmra.mxu0 %v1074
        %v1368 = vpop.f32.mrf.mxu0
        %v1369 = vadd.f32 %v1117, %v1368
        %v1370 = vpop.f32.mrf.mxu0
        %v1371 = vadd.f32 %v1121, %v1370
        %v1372 = vpop.f32.mrf.mxu0
        %v1373 = vadd.f32 %v1117, %v1372
        %v1374 = vpop.f32.mrf.mxu0
        %v1375 = vadd.f32 %v1121, %v1374
        %1376 = vmatprep.mubr.bf16.mxu0 %v1077
        %1377 = vmatmul.mubr.bf16.gmra.mxu0 %v1076
        %v1378 = vpop.f32.mrf.mxu0
        %v1379 = vadd.f32 %v1117, %v1378
        %v1380 = vpop.f32.mrf.mxu0
        %v1381 = vadd.f32 %v1121, %v1380
        %v1382 = vpop.f32.mrf.mxu0
        %v1383 = vadd.f32 %v1117, %v1382
        %v1384 = vpop.f32.mrf.mxu0
        %v1385 = vadd.f32 %v1121, %v1384
        %1386 = vmatprep.mubr.bf16.mxu0 %v1079
        %1387 = vmatmul.mubr.bf16.gmra.mxu0 %v1078
        %v1388 = vpop.f32.mrf.mxu0
        %v1389 = vadd.f32 %v1117, %v1388
        %v1390 = vpop.f32.mrf.mxu0
        %v1391 = vadd.f32 %v1121, %v1390
        %v1392 = vpop.f32.mrf.mxu0
        %v1393 = vadd.f32 %v1117, %v1392
        %v1394 = vpop.f32.mrf.mxu0
        %v1395 = vadd.f32 %v1121, %v1394
        %1396 = vdwg.mxu0
        %v1397 = vmul.f32 %v1319, 0.01
        %v1398 = vmul.f32 %v1321, 0.01
        %v1399 = vmul.f32 %v1323, 0.01
        %v1400 = vmul.f32 %v1325, 0.01
        %v1401 = vmul.f32 %v1329, 0.01
        %v1402 = vmul.f32 %v1331, 0.01
        %v1403 = vmul.f32 %v1333, 0.01
        %v1404 = vmul.f32 %v1335, 0.01
        %v1405 = vmul.f32 %v1339, 0.01
        %v1406 = vmul.f32 %v1341, 0.01
        %v1407 = vmul.f32 %v1343, 0.01
        %v1408 = vmul.f32 %v1345, 0.01
        %v1409 = vmul.f32 %v1349, 0.01
        %v1410 = vmul.f32 %v1351, 0.01
        %v1411 = vmul.f32 %v1353, 0.01
        %v1412 = vmul.f32 %v1355, 0.01
        %v1413 = vmul.f32 %v1359, 0.01
        %v1414 = vmul.f32 %v1361, 0.01
        %v1415 = vmul.f32 %v1363, 0.01
        %v1416 = vmul.f32 %v1365, 0.01
        %v1417 = vmul.f32 %v1369, 0.01
        %v1418 = vmul.f32 %v1371, 0.01
        %v1419 = vmul.f32 %v1373, 0.01
        %v1420 = vmul.f32 %v1375, 0.01
        %v1421 = vmul.f32 %v1379, 0.01
        %v1422 = vmul.f32 %v1381, 0.01
        %v1423 = vmul.f32 %v1383, 0.01
        %v1424 = vmul.f32 %v1385, 0.01
        %v1425 = vmul.f32 %v1389, 0.01
        %v1426 = vmul.f32 %v1391, 0.01
        %v1427 = vmul.f32 %v1393, 0.01
        %v1428 = vmul.f32 %v1395, 0.01
        %v1429 = vmax.f32 %v1319, %v1397
        %v1430 = vmax.f32 %v1321, %v1398
        %v1431 = vmax.f32 %v1323, %v1399
        %v1432 = vmax.f32 %v1325, %v1400
        %v1433 = vmax.f32 %v1329, %v1401
        %v1434 = vmax.f32 %v1331, %v1402
        %v1435 = vmax.f32 %v1333, %v1403
        %v1436 = vmax.f32 %v1335, %v1404
        %v1437 = vmax.f32 %v1339, %v1405
        %v1438 = vmax.f32 %v1341, %v1406
        %v1439 = vmax.f32 %v1343, %v1407
        %v1440 = vmax.f32 %v1345, %v1408
        %v1441 = vmax.f32 %v1349, %v1409
        %v1442 = vmax.f32 %v1351, %v1410
        %v1443 = vmax.f32 %v1353, %v1411
        %v1444 = vmax.f32 %v1355, %v1412
        %v1445 = vmax.f32 %v1359, %v1413
        %v1446 = vmax.f32 %v1361, %v1414
        %v1447 = vmax.f32 %v1363, %v1415
        %v1448 = vmax.f32 %v1365, %v1416
        %v1449 = vmax.f32 %v1369, %v1417
        %v1450 = vmax.f32 %v1371, %v1418
        %v1451 = vmax.f32 %v1373, %v1419
        %v1452 = vmax.f32 %v1375, %v1420
        %v1453 = vmax.f32 %v1379, %v1421
        %v1454 = vmax.f32 %v1381, %v1422
        %v1455 = vmax.f32 %v1383, %v1423
        %v1456 = vmax.f32 %v1385, %v1424
        %v1457 = vmax.f32 %v1389, %v1425
        %v1458 = vmax.f32 %v1391, %v1426
        %v1459 = vmax.f32 %v1393, %v1427
        %v1460 = vmax.f32 %v1395, %v1428
        %v1461 = vpack.c.bf16 %v1431, %v1429
        %v1462 = vpack.c.bf16 %v1432, %v1430
        %v1463 = vpack.c.bf16 %v1435, %v1433
        %v1464 = vpack.c.bf16 %v1436, %v1434
        %v1465 = vpack.c.bf16 %v1439, %v1437
        %v1466 = vpack.c.bf16 %v1440, %v1438
        %v1467 = vpack.c.bf16 %v1443, %v1441
        %v1468 = vpack.c.bf16 %v1444, %v1442
        %v1469 = vpack.c.bf16 %v1447, %v1445
        %v1470 = vpack.c.bf16 %v1448, %v1446
        %v1471 = vpack.c.bf16 %v1451, %v1449
        %v1472 = vpack.c.bf16 %v1452, %v1450
        %v1473 = vpack.c.bf16 %v1455, %v1453
        %v1474 = vpack.c.bf16 %v1456, %v1454
        %v1475 = vpack.c.bf16 %v1459, %v1457
        %v1476 = vpack.c.bf16 %v1460, %v1458
        %v1477 = vld [vmem:[#allocation3] sm:$0xff]
        %v1478 = vld [vmem:[#allocation3 + $0x8] sm:$0xff]
        %v1479 = vld [vmem:[#allocation3 + $0x10] sm:$0xff]
        %v1480 = vld [vmem:[#allocation3 + $0x18] sm:$0xff]
        %v1481 = vld [vmem:[#allocation3 + $0x20] sm:$0xff]
        %v1482 = vld [vmem:[#allocation3 + $0x28] sm:$0xff]
        %v1483 = vld [vmem:[#allocation3 + $0x30] sm:$0xff]
        %v1484 = vld [vmem:[#allocation3 + $0x38] sm:$0xff]
        %v1485 = vld [vmem:[#allocation3 + $0x40] sm:$0xff]
        %v1486 = vld [vmem:[#allocation3 + $0x48] sm:$0xff]
        %v1487 = vld [vmem:[#allocation3 + $0x50] sm:$0xff]
        %v1488 = vld [vmem:[#allocation3 + $0x58] sm:$0xff]
        %v1489 = vld [vmem:[#allocation3 + $0x60] sm:$0xff]
        %v1490 = vld [vmem:[#allocation3 + $0x68] sm:$0xff]
        %v1491 = vld [vmem:[#allocation3 + $0x70] sm:$0xff]
        %v1492 = vld [vmem:[#allocation3 + $0x78] sm:$0xff]
        %v1493 = vld [vmem:[#allocation3 + $0x80] sm:$0xff]
        %v1494 = vld [vmem:[#allocation3 + $0x88] sm:$0xff]
        %v1495 = vld [vmem:[#allocation3 + $0x90] sm:$0xff]
        %v1496 = vld [vmem:[#allocation3 + $0x98] sm:$0xff]
        %v1497 = vld [vmem:[#allocation3 + $0xa0] sm:$0xff]
        %v1498 = vld [vmem:[#allocation3 + $0xa8] sm:$0xff]
        %v1499 = vld [vmem:[#allocation3 + $0xb0] sm:$0xff]
        %v1500 = vld [vmem:[#allocation3 + $0xb8] sm:$0xff]
        %v1501 = vld [vmem:[#allocation3 + $0xc0] sm:$0xff]
        %v1502 = vld [vmem:[#allocation3 + $0xc8] sm:$0xff]
        %v1503 = vld [vmem:[#allocation3 + $0xd0] sm:$0xff]
        %v1504 = vld [vmem:[#allocation3 + $0xd8] sm:$0xff]
        %v1505 = vld [vmem:[#allocation3 + $0xe0] sm:$0xff]
        %v1506 = vld [vmem:[#allocation3 + $0xe8] sm:$0xff]
        %v1507 = vld [vmem:[#allocation3 + $0xf0] sm:$0xff]
        %v1508 = vld [vmem:[#allocation3 + $0xf8] sm:$0xff]
        %v1509 = vld [vmem:[%s8] sm:$0x3]
        %v1511 = vlaneseq
        %v1512 = vshrl.u32 %v1511, 7
        %v1513 = vsub.s32 0, %v1512
        %v1514 = vrot.slane %v1509, %v1513
        %v1515 = vlaneseq
        %v1516 = vshrl.u32 %v1515, 7
        %v1517 = vsub.s32 1, %v1516
        %v1518 = vrot.slane %v1509, %v1517
        %v1553 = vunpack.c.l.b16 %v1477
        %v1554 = vunpack.c.h.b16 %v1477
        %v1555 = vunpack.c.l.b16 %v1478
        %v1556 = vunpack.c.h.b16 %v1478
        %v1557 = vunpack.c.l.b16 %v1479
        %v1558 = vunpack.c.h.b16 %v1479
        %v1559 = vunpack.c.l.b16 %v1480
        %v1560 = vunpack.c.h.b16 %v1480
        %v1561 = vunpack.c.l.b16 %v1481
        %v1562 = vunpack.c.h.b16 %v1481
        %v1563 = vunpack.c.l.b16 %v1482
        %v1564 = vunpack.c.h.b16 %v1482
        %v1565 = vunpack.c.l.b16 %v1483
        %v1566 = vunpack.c.h.b16 %v1483
        %v1567 = vunpack.c.l.b16 %v1484
        %v1568 = vunpack.c.h.b16 %v1484
        %v1569 = vunpack.c.l.b16 %v1485
        %v1570 = vunpack.c.h.b16 %v1485
        %v1571 = vunpack.c.l.b16 %v1486
        %v1572 = vunpack.c.h.b16 %v1486
        %v1573 = vunpack.c.l.b16 %v1487
        %v1574 = vunpack.c.h.b16 %v1487
        %v1575 = vunpack.c.l.b16 %v1488
        %v1576 = vunpack.c.h.b16 %v1488
        %v1577 = vunpack.c.l.b16 %v1489
        %v1578 = vunpack.c.h.b16 %v1489
        %v1579 = vunpack.c.l.b16 %v1490
        %v1580 = vunpack.c.h.b16 %v1490
        %v1581 = vunpack.c.l.b16 %v1491
        %v1582 = vunpack.c.h.b16 %v1491
        %v1583 = vunpack.c.l.b16 %v1492
        %v1584 = vunpack.c.h.b16 %v1492
        %v1585 = vunpack.c.l.b16 %v1493
        %v1586 = vunpack.c.h.b16 %v1493
        %v1587 = vunpack.c.l.b16 %v1494
        %v1588 = vunpack.c.h.b16 %v1494
        %v1589 = vunpack.c.l.b16 %v1495
        %v1590 = vunpack.c.h.b16 %v1495
        %v1591 = vunpack.c.l.b16 %v1496
        %v1592 = vunpack.c.h.b16 %v1496
        %v1593 = vunpack.c.l.b16 %v1497
        %v1594 = vunpack.c.h.b16 %v1497
        %v1595 = vunpack.c.l.b16 %v1498
        %v1596 = vunpack.c.h.b16 %v1498
        %v1597 = vunpack.c.l.b16 %v1499
        %v1598 = vunpack.c.h.b16 %v1499
        %v1599 = vunpack.c.l.b16 %v1500
        %v1600 = vunpack.c.h.b16 %v1500
        %v1601 = vunpack.c.l.b16 %v1501
        %v1602 = vunpack.c.h.b16 %v1501
        %v1603 = vunpack.c.l.b16 %v1502
        %v1604 = vunpack.c.h.b16 %v1502
        %v1605 = vunpack.c.l.b16 %v1503
        %v1606 = vunpack.c.h.b16 %v1503
        %v1607 = vunpack.c.l.b16 %v1504
        %v1608 = vunpack.c.h.b16 %v1504
        %v1609 = vunpack.c.l.b16 %v1505
        %v1610 = vunpack.c.h.b16 %v1505
        %v1611 = vunpack.c.l.b16 %v1506
        %v1612 = vunpack.c.h.b16 %v1506
        %v1613 = vunpack.c.l.b16 %v1507
        %v1614 = vunpack.c.h.b16 %v1507
        %v1615 = vunpack.c.l.b16 %v1508
        %v1616 = vunpack.c.h.b16 %v1508
        %v1617 = vpack.c.b16 %v1555, %v1553
        %v1618 = vpack.c.b16 %v1556, %v1554
        %v1619 = vpack.c.b16 %v1559, %v1557
        %v1620 = vpack.c.b16 %v1560, %v1558
        %v1621 = vpack.c.b16 %v1563, %v1561
        %v1622 = vpack.c.b16 %v1564, %v1562
        %v1623 = vpack.c.b16 %v1567, %v1565
        %v1624 = vpack.c.b16 %v1568, %v1566
        %v1625 = vpack.c.b16 %v1571, %v1569
        %v1626 = vpack.c.b16 %v1572, %v1570
        %v1627 = vpack.c.b16 %v1575, %v1573
        %v1628 = vpack.c.b16 %v1576, %v1574
        %v1629 = vpack.c.b16 %v1579, %v1577
        %v1630 = vpack.c.b16 %v1580, %v1578
        %v1631 = vpack.c.b16 %v1583, %v1581
        %v1632 = vpack.c.b16 %v1584, %v1582
        %v1633 = vpack.c.b16 %v1587, %v1585
        %v1634 = vpack.c.b16 %v1588, %v1586
        %v1635 = vpack.c.b16 %v1591, %v1589
        %v1636 = vpack.c.b16 %v1592, %v1590
        %v1637 = vpack.c.b16 %v1595, %v1593
        %v1638 = vpack.c.b16 %v1596, %v1594
        %v1639 = vpack.c.b16 %v1599, %v1597
        %v1640 = vpack.c.b16 %v1600, %v1598
        %v1641 = vpack.c.b16 %v1603, %v1601
        %v1642 = vpack.c.b16 %v1604, %v1602
        %v1643 = vpack.c.b16 %v1607, %v1605
        %v1644 = vpack.c.b16 %v1608, %v1606
        %v1645 = vpack.c.b16 %v1611, %v1609
        %v1646 = vpack.c.b16 %v1612, %v1610
        %v1647 = vpack.c.b16 %v1615, %v1613
        %v1648 = vpack.c.b16 %v1616, %v1614
        %1681 = vmatprep.subr.bf16.mxu0 %v1632
        %1682 = vmatpush1.bf16.msra.mxu0 %v1631
        %1683 = vmatprep.subr.bf16.mxu0 %v1630
        %1684 = vmatpush1.bf16.msra.mxu0 %v1629
        %1685 = vmatprep.subr.bf16.mxu0 %v1628
        %1686 = vmatpush1.bf16.msra.mxu0 %v1627
        %1687 = vmatprep.subr.bf16.mxu0 %v1626
        %1688 = vmatpush1.bf16.msra.mxu0 %v1625
        %1689 = vmatprep.subr.bf16.mxu0 %v1624
        %1690 = vmatpush1.bf16.msra.mxu0 %v1623
        %1691 = vmatprep.subr.bf16.mxu0 %v1622
        %1692 = vmatpush1.bf16.msra.mxu0 %v1621
        %1693 = vmatprep.subr.bf16.mxu0 %v1620
        %1694 = vmatpush1.bf16.msra.mxu0 %v1619
        %1695 = vmatprep.subr.bf16.mxu0 %v1618
        %1696 = vmatpush1.bf16.msra.mxu0 %v1617
        %1697 = vmatprep.subr.bf16.mxu0 %v1648
        %1698 = vmatpush2.bf16.msra.mxu0 %v1647
        %1699 = vmatprep.subr.bf16.mxu0 %v1646
        %1700 = vmatpush2.bf16.msra.mxu0 %v1645
        %1701 = vmatprep.subr.bf16.mxu0 %v1644
        %1702 = vmatpush2.bf16.msra.mxu0 %v1643
        %1703 = vmatprep.subr.bf16.mxu0 %v1642
        %1704 = vmatpush2.bf16.msra.mxu0 %v1641
        %1705 = vmatprep.subr.bf16.mxu0 %v1640
        %1706 = vmatpush2.bf16.msra.mxu0 %v1639
        %1707 = vmatprep.subr.bf16.mxu0 %v1638
        %1708 = vmatpush2.bf16.msra.mxu0 %v1637
        %1709 = vmatprep.subr.bf16.mxu0 %v1636
        %1710 = vmatpush2.bf16.msra.mxu0 %v1635
        %1711 = vmatprep.subr.bf16.mxu0 %v1634
        %1712 = vmatpush2.bf16.msra.mxu0 %v1633
        %1713 = vmatprep.mubr.bf16.mxu0 %v1462
        %1714 = vmatmul.mubr.bf16.gmra.mxu0 %v1461
        %v1715 = vpop.f32.mrf.mxu0
        %v1716 = vadd.f32 %v1514, %v1715
        %v1717 = vpop.f32.mrf.mxu0
        %v1718 = vadd.f32 %v1518, %v1717
        %v1719 = vpop.f32.mrf.mxu0
        %v1720 = vadd.f32 %v1514, %v1719
        %v1721 = vpop.f32.mrf.mxu0
        %v1722 = vadd.f32 %v1518, %v1721
        %1723 = vmatprep.mubr.bf16.mxu0 %v1464
        %1724 = vmatmul.mubr.bf16.gmra.mxu0 %v1463
        %v1725 = vpop.f32.mrf.mxu0
        %v1726 = vadd.f32 %v1514, %v1725
        %v1727 = vpop.f32.mrf.mxu0
        %v1728 = vadd.f32 %v1518, %v1727
        %v1729 = vpop.f32.mrf.mxu0
        %v1730 = vadd.f32 %v1514, %v1729
        %v1731 = vpop.f32.mrf.mxu0
        %v1732 = vadd.f32 %v1518, %v1731
        %1733 = vmatprep.mubr.bf16.mxu0 %v1466
        %1734 = vmatmul.mubr.bf16.gmra.mxu0 %v1465
        %v1735 = vpop.f32.mrf.mxu0
        %v1736 = vadd.f32 %v1514, %v1735
        %v1737 = vpop.f32.mrf.mxu0
        %v1738 = vadd.f32 %v1518, %v1737
        %v1739 = vpop.f32.mrf.mxu0
        %v1740 = vadd.f32 %v1514, %v1739
        %v1741 = vpop.f32.mrf.mxu0
        %v1742 = vadd.f32 %v1518, %v1741
        %1743 = vmatprep.mubr.bf16.mxu0 %v1468
        %1744 = vmatmul.mubr.bf16.gmra.mxu0 %v1467
        %v1745 = vpop.f32.mrf.mxu0
        %v1746 = vadd.f32 %v1514, %v1745
        %v1747 = vpop.f32.mrf.mxu0
        %v1748 = vadd.f32 %v1518, %v1747
        %v1749 = vpop.f32.mrf.mxu0
        %v1750 = vadd.f32 %v1514, %v1749
        %v1751 = vpop.f32.mrf.mxu0
        %v1752 = vadd.f32 %v1518, %v1751
        %1753 = vmatprep.mubr.bf16.mxu0 %v1470
        %1754 = vmatmul.mubr.bf16.gmra.mxu0 %v1469
        %v1755 = vpop.f32.mrf.mxu0
        %v1756 = vadd.f32 %v1514, %v1755
        %v1757 = vpop.f32.mrf.mxu0
        %v1758 = vadd.f32 %v1518, %v1757
        %v1759 = vpop.f32.mrf.mxu0
        %v1760 = vadd.f32 %v1514, %v1759
        %v1761 = vpop.f32.mrf.mxu0
        %v1762 = vadd.f32 %v1518, %v1761
        %1763 = vmatprep.mubr.bf16.mxu0 %v1472
        %1764 = vmatmul.mubr.bf16.gmra.mxu0 %v1471
        %v1765 = vpop.f32.mrf.mxu0
        %v1766 = vadd.f32 %v1514, %v1765
        %v1767 = vpop.f32.mrf.mxu0
        %v1768 = vadd.f32 %v1518, %v1767
        %v1769 = vpop.f32.mrf.mxu0
        %v1770 = vadd.f32 %v1514, %v1769
        %v1771 = vpop.f32.mrf.mxu0
        %v1772 = vadd.f32 %v1518, %v1771
        %1773 = vmatprep.mubr.bf16.mxu0 %v1474
        %1774 = vmatmul.mubr.bf16.gmra.mxu0 %v1473
        %v1775 = vpop.f32.mrf.mxu0
        %v1776 = vadd.f32 %v1514, %v1775
        %v1777 = vpop.f32.mrf.mxu0
        %v1778 = vadd.f32 %v1518, %v1777
        %v1779 = vpop.f32.mrf.mxu0
        %v1780 = vadd.f32 %v1514, %v1779
        %v1781 = vpop.f32.mrf.mxu0
        %v1782 = vadd.f32 %v1518, %v1781
        %1783 = vmatprep.mubr.bf16.mxu0 %v1476
        %1784 = vmatmul.mubr.bf16.gmra.mxu0 %v1475
        %v1785 = vpop.f32.mrf.mxu0
        %v1786 = vadd.f32 %v1514, %v1785
        %v1787 = vpop.f32.mrf.mxu0
        %v1788 = vadd.f32 %v1518, %v1787
        %v1789 = vpop.f32.mrf.mxu0
        %v1790 = vadd.f32 %v1514, %v1789
        %v1791 = vpop.f32.mrf.mxu0
        %v1792 = vadd.f32 %v1518, %v1791
        %1793 = vdwg.mxu0
        %v1794 = vmul.f32 %v1716, 0.01
        %v1795 = vmul.f32 %v1718, 0.01
        %v1796 = vmul.f32 %v1720, 0.01
        %v1797 = vmul.f32 %v1722, 0.01
        %v1798 = vmul.f32 %v1726, 0.01
        %v1799 = vmul.f32 %v1728, 0.01
        %v1800 = vmul.f32 %v1730, 0.01
        %v1801 = vmul.f32 %v1732, 0.01
        %v1802 = vmul.f32 %v1736, 0.01
        %v1803 = vmul.f32 %v1738, 0.01
        %v1804 = vmul.f32 %v1740, 0.01
        %v1805 = vmul.f32 %v1742, 0.01
        %v1806 = vmul.f32 %v1746, 0.01
        %v1807 = vmul.f32 %v1748, 0.01
        %v1808 = vmul.f32 %v1750, 0.01
        %v1809 = vmul.f32 %v1752, 0.01
        %v1810 = vmul.f32 %v1756, 0.01
        %v1811 = vmul.f32 %v1758, 0.01
        %v1812 = vmul.f32 %v1760, 0.01
        %v1813 = vmul.f32 %v1762, 0.01
        %v1814 = vmul.f32 %v1766, 0.01
        %v1815 = vmul.f32 %v1768, 0.01
        %v1816 = vmul.f32 %v1770, 0.01
        %v1817 = vmul.f32 %v1772, 0.01
        %v1818 = vmul.f32 %v1776, 0.01
        %v1819 = vmul.f32 %v1778, 0.01
        %v1820 = vmul.f32 %v1780, 0.01
        %v1821 = vmul.f32 %v1782, 0.01
        %v1822 = vmul.f32 %v1786, 0.01
        %v1823 = vmul.f32 %v1788, 0.01
        %v1824 = vmul.f32 %v1790, 0.01
        %v1825 = vmul.f32 %v1792, 0.01
        %v1826 = vmax.f32 %v1716, %v1794
        %v1827 = vmax.f32 %v1718, %v1795
        %v1828 = vmax.f32 %v1720, %v1796
        %v1829 = vmax.f32 %v1722, %v1797
        %v1830 = vmax.f32 %v1726, %v1798
        %v1831 = vmax.f32 %v1728, %v1799
        %v1832 = vmax.f32 %v1730, %v1800
        %v1833 = vmax.f32 %v1732, %v1801
        %v1834 = vmax.f32 %v1736, %v1802
        %v1835 = vmax.f32 %v1738, %v1803
        %v1836 = vmax.f32 %v1740, %v1804
        %v1837 = vmax.f32 %v1742, %v1805
        %v1838 = vmax.f32 %v1746, %v1806
        %v1839 = vmax.f32 %v1748, %v1807
        %v1840 = vmax.f32 %v1750, %v1808
        %v1841 = vmax.f32 %v1752, %v1809
        %v1842 = vmax.f32 %v1756, %v1810
        %v1843 = vmax.f32 %v1758, %v1811
        %v1844 = vmax.f32 %v1760, %v1812
        %v1845 = vmax.f32 %v1762, %v1813
        %v1846 = vmax.f32 %v1766, %v1814
        %v1847 = vmax.f32 %v1768, %v1815
        %v1848 = vmax.f32 %v1770, %v1816
        %v1849 = vmax.f32 %v1772, %v1817
        %v1850 = vmax.f32 %v1776, %v1818
        %v1851 = vmax.f32 %v1778, %v1819
        %v1852 = vmax.f32 %v1780, %v1820
        %v1853 = vmax.f32 %v1782, %v1821
        %v1854 = vmax.f32 %v1786, %v1822
        %v1855 = vmax.f32 %v1788, %v1823
        %v1856 = vmax.f32 %v1790, %v1824
        %v1857 = vmax.f32 %v1792, %v1825
        %v1858 = vld [vmem:[%s9] sm:$0x3]
        %v1859 = vld [vmem:[#allocation2] sm:$0x1]
        %1861 = vset.pattern.permute.xlu0 0
        %1862 = vperm.xlu0 %1861, %v1859
        %v1863 = vpop.permute.xlu0 %1862
        %v1865 = vlaneseq
        %v1866 = vshrl.u32 %v1865, 7
        %v1867 = vsub.s32 0, %v1866
        %v1868 = vrot.slane %v1863, %v1867
        %v1870 = vlaneseq
        %v1871 = vshrl.u32 %v1870, 7
        %v1872 = vsub.s32 0, %v1871
        %v1873 = vrot.slane %v1858, %v1872
        %v1874 = vlaneseq
        %v1875 = vshrl.u32 %v1874, 7
        %v1876 = vsub.s32 1, %v1875
        %v1877 = vrot.slane %v1858, %v1876
        %1880 = vmatprep.subr.mxu0 %v1857
        %1881 = vmatpush1.xpose.msra.mxu0 %v1856
        %1882 = vmatprep.subr.mxu0 %v1855
        %1883 = vmatpush1.xpose.msra.mxu0 %v1854
        %1884 = vmatprep.subr.mxu0 %v1853
        %1885 = vmatpush1.xpose.msra.mxu0 %v1852
        %1886 = vmatprep.subr.mxu0 %v1851
        %1887 = vmatpush1.xpose.msra.mxu0 %v1850
        %1888 = vmatprep.subr.mxu0 %v1849
        %1889 = vmatpush1.xpose.msra.mxu0 %v1848
        %1890 = vmatprep.subr.mxu0 %v1847
        %1891 = vmatpush1.xpose.msra.mxu0 %v1846
        %1892 = vmatprep.subr.mxu0 %v1845
        %1893 = vmatpush1.xpose.msra.mxu0 %v1844
        %1894 = vmatprep.subr.mxu0 %v1843
        %1895 = vmatpush1.xpose.msra.mxu0 %v1842
        %1896 = vmatprep.subr.mxu0 %v1841
        %1897 = vmatpush1.xpose.msra.mxu0 %v1840
        %1898 = vmatprep.subr.mxu0 %v1839
        %1899 = vmatpush1.xpose.msra.mxu0 %v1838
        %1900 = vmatprep.subr.mxu0 %v1837
        %1901 = vmatpush1.xpose.msra.mxu0 %v1836
        %1902 = vmatprep.subr.mxu0 %v1835
        %1903 = vmatpush1.xpose.msra.mxu0 %v1834
        %1904 = vmatprep.subr.mxu0 %v1833
        %1905 = vmatpush1.xpose.msra.mxu0 %v1832
        %1906 = vmatprep.subr.mxu0 %v1831
        %1907 = vmatpush1.xpose.msra.mxu0 %v1830
        %1908 = vmatprep.subr.mxu0 %v1829
        %1909 = vmatpush1.xpose.msra.mxu0 %v1828
        %1910 = vmatprep.subr.mxu0 %v1827
        %1911 = vmatpush1.xpose.msra.mxu0 %v1826
        %1912 = vmatprep.subr.mxu0 0.0
        %1913 = vmatpush2.xpose.msra.mxu0 0.0
        %1914 = vmatprep.subr.mxu0 0.0
        %1915 = vmatpush2.xpose.msra.mxu0 0.0
        %1916 = vmatprep.subr.mxu0 0.0
        %1917 = vmatpush2.xpose.msra.mxu0 0.0
        %1918 = vmatprep.subr.mxu0 0.0
        %1919 = vmatpush2.xpose.msra.mxu0 0.0
        %1920 = vmatprep.subr.mxu0 0.0
        %1921 = vmatpush2.xpose.msra.mxu0 0.0
        %1922 = vmatprep.subr.mxu0 0.0
        %1923 = vmatpush2.xpose.msra.mxu0 0.0
        %1924 = vmatprep.subr.mxu0 0.0
        %1925 = vmatpush2.xpose.msra.mxu0 0.0
        %1926 = vmatprep.subr.mxu0 0.0
        %1927 = vmatpush2.xpose.msra.mxu0 0.0
        %1928 = vmatprep.subr.mxu0 0.0
        %1929 = vmatpush2.xpose.msra.mxu0 0.0
        %1930 = vmatprep.subr.mxu0 0.0
        %1931 = vmatpush2.xpose.msra.mxu0 0.0
        %1932 = vmatprep.subr.mxu0 0.0
        %1933 = vmatpush2.xpose.msra.mxu0 0.0
        %1934 = vmatprep.subr.mxu0 0.0
        %1935 = vmatpush2.xpose.msra.mxu0 0.0
        %1936 = vmatprep.subr.mxu0 0.0
        %1937 = vmatpush2.xpose.msra.mxu0 0.0
        %1938 = vmatprep.subr.mxu0 0.0
        %1939 = vmatpush2.xpose.msra.mxu0 0.0
        %1940 = vmatprep.subr.mxu0 0.0
        %1941 = vmatpush2.xpose.msra.mxu0 0.0
        %1942 = vmatprep.subr.mxu0 0.0
        %1943 = vmatpush2.xpose.msra.mxu0 0.0
        %1944 = vmatprep.mubr.f32.mxu0 %v1877
        %1945 = vmatmul.mubr.f32.gmra.mxu0 %v1873
        %v1946 = vpop.f32.mrf.mxu0
        %v1947 = vadd.f32 %v1868, %v1946
        %v1948 = vpop.f32.mrf.mxu0
        %1949 = vdwg.mxu0
        %v1950 = vsub.f32 0.0, %v1947
        %v1951 = vmul.f32 %v1950, 1.442695
        %v1952 = vpow.pop %v1951
        %v1953 = vadd.f32 %v1952, 1.0
        %v1954 = vrcp.pop %v1953
        %v1955 = vmul.f32 1.0, %v1954
        %v1956 = vlaneseq
        %v1957 = vshrl.u32 %v1956, 7
        %vm1958 = vcmp.eq.s32.totalorder %v1957, 1
        %v1959 = vsub.f32 1.0, %v1955
        %v1960 = vlaneseq
        %v1961 = vshrl.u32 %v1960, 7
        %v1962 = vsub.s32 0, %v1961
        %v1963 = vrot.slane %v1955, %v1962
        %v1964 = vlaneseq
        %v1965 = vshrl.u32 %v1964, 7
        %v1966 = vsub.s32 0, %v1965
        %v1967 = vrot.slane %v1959, %v1966
        %v1968 = vsel %vm1958, %v1963, %v1967
        %1969 = vst [vmem:[%s397] sm:$0x3] %v1968
        %s1970 = sand.u32 %s272, 1
        %s1971 = scalar_lea.sflag [#allocation5], %s1970
        %s1972 = sand.u32 %s272, 1
        %s1973 = smul.addr %s1972, 2
        %s1974 = scalar_lea.vmem [#allocation6], %s1973
        // Predicated region
        $region69: #{mlp_forward.1} parent=63 // pred_check
          %p1975 = pneg %p282
        $region70: #{mlp_forward.1} parent=63 // pred_check_branch
          %1977 = sbr.rel (%p1975) target = $region72
        $region71: #{mlp_forward.1} parent=63 // pred_region
          %s1979 = ssub.s32 32, 32
          %1980 = vsyncadd %s1971, %s1979
          %s1981 = smul.addr %s28, 32
          %s1982 = scalar_lea.hbm %s11, %s1981
          %s1984 = sshll.u32 %s1974, 4
          %s1985 = int_to_ptr.vmem [resolvable:$true] %s1984
          %1987 = dma.vmem_to_hbm [thread:$0]  %s1985, 32, %s1982, %s1971
        $region72: #{mlp_forward.1} parent=63 // pred_fallthru
          _
      $region64: #{mlp_forward.1} parent=5 // pred_fallthru
        _
      %p1988 = scmp.le.s32.totalorder 2, %s23
      // Predicated region
      $region73: #{mlp_forward.1} parent=5 // pred_check
        %p1989 = pneg %p1988
      $region74: #{mlp_forward.1} parent=5 // pred_check_branch
        %1991 = sbr.rel (%p1989) target = $region76
      $region75: #{mlp_forward.1} parent=5 // pred_region
        %s1992 = ssub.s32 %s23, 2
        // Predicated region
        $region77: #{mlp_forward.1} parent=75 // pred_check
          %p1993 = pneg %p288
        $region78: #{mlp_forward.1} parent=75 // pred_check_branch
          %1995 = sbr.rel (%p1993) target = $region80
        $region79: #{mlp_forward.1} parent=75 // pred_region
          %s1996 = sand.u32 %s273, 1
          %s1997 = scalar_lea.sflag [#allocation5], %s1996
          %s1998 = sand.u32 %s273, 1
          %s1999 = smul.addr %s1998, 2
          %s2000 = scalar_lea.vmem [#allocation6], %s1999
          %2001 = dma.done %s1997, 32
        $region80: #{mlp_forward.1} parent=75 // pred_fallthru
          _
      $region76: #{mlp_forward.1} parent=5 // pred_fallthru
        _
    $region6: #{mlp_forward.1} parent=1 // loop_footer
      %s27 = sadd.s32 1, %s23
    $region7: #{mlp_forward.1} parent=1 // loop_footer_branch
      %22 = sbr.rel target = $region3
    $region8: #{mlp_forward.1} parent=1 // loop_exit
      _
    %2002 = vsyncpa [#allocation4], 1
    %s2003 = scalar_lea.sflag [#allocation4], 1
    %2004 = vsyncpa %s2003, 1
    %2005 = vsyncpa [#allocation5], 1
    %s2006 = scalar_lea.sflag [#allocation5], 1
    %2007 = vsyncpa %s2006, 1

</llo_original>
